<compile_context>
chip_gen: v7x
topology: tpu7x:2x2x1
jax: 0.10.0
libtpu: 0.0.40
codegen_flags: <defaults>
</compile_context>

<pallas_src>
import numpy as np
import jax
import jax.numpy as jnp
from jax import lax
from jax.experimental import pallas as pl
from jax.experimental.pallas import tpu as pltpu

IN_CHANNELS = 4
OUT_CHANNELS = 8
STRIDE = 2
SEQ_LEN = 16
BATCH = 2
RES_KERNEL = 7
DOWN_KERNEL = 2 * STRIDE            # CausalConv1d(in, out, kernel=2*stride, stride=stride)
DILATIONS = (1, 3, 9)

L = SEQ_LEN
L_OUT = SEQ_LEN // STRIDE
MAX_PAD = max(DILATIONS) * (RES_KERNEL - 1)            # 54: largest causal left pad
SEG = ((MAX_PAD + SEQ_LEN + 127) // 128) * 128         # per-batch padded segment (lane-tile aligned)
SLAB_COLS = RES_KERNEL * IN_CHANNELS + 1               # 29: widest K*C_in, plus one bias column
BIAS_COL = SLAB_COLS - 1
SLAB_ROWS = 6 * IN_CHANNELS + OUT_CHANNELS             # 32: 6 residual convs + downsample conv


# ----------------------------- kernel helpers --------------------------------
def _elu(v):
    # ELU(alpha=1); clamp the exp argument so the untaken branch cannot overflow.
    return jnp.where(v > 0, v, jnp.exp(jnp.minimum(v, 0.0)) - 1.0)


def _fused_causal_conv(h, w_ref, row, c_out, K, dilation, pad_ref, col_ref):
    """Causal dilated conv (stride 1) over the lane-packed batch as ONE matmul.

    h:       (C_in, B*L) value, batch packed along lanes.
    w_ref:   (32, 29) packed parameter slab; rows [row, row+c_out), cols
             [0, K*C_in) hold the weights in [o, k*C_in + ci] layout, col 28 = bias.
    pad_ref: (C_in, B*SEG) staging scratch; the left MAX_PAD of every segment
             is always zero -> causal padding for free.
    col_ref: (RES_KERNEL*C_in, B*L) im2col scratch.
    returns  (c_out, B*L) f32.
    """
    pad = dilation * (K - 1)
    # Stage the activation into its per-batch padded slot.
    for b in range(BATCH):
        pad_ref[:, b * SEG + MAX_PAD: b * SEG + MAX_PAD + L] = h[:, b * L:(b + 1) * L]
    # Assemble the im2col operand: row block k = k-th dilated tap of every channel.
    for k in range(K):
        off = MAX_PAD - pad + k * dilation
        for b in range(BATCH):
            col_ref[k * IN_CHANNELS:(k + 1) * IN_CHANNELS, b * L:(b + 1) * L] = (
                pad_ref[:, b * SEG + off: b * SEG + off + L])
    cols = col_ref[0:K * IN_CHANNELS, :]                        # (K*C_in, B*L)
    w = w_ref[row:row + c_out, 0:K * IN_CHANNELS]               # (c_out, K*C_in)
    bias = w_ref[row:row + c_out, BIAS_COL:BIAS_COL + 1]        # (c_out, 1)
    return jnp.dot(w, cols, preferred_element_type=jnp.float32) + bias


def encoder_block_kernel(x_ref, w_ref, o_ref, pad_ref, col_ref):
    # Zero the padded scratch once; only [MAX_PAD, MAX_PAD+L) of each segment is
    # ever overwritten, so the causal zero pad stays valid for every conv/dilation.
    pad_ref[...] = jnp.zeros_like(pad_ref)

    # Pack the batch along the lane (time) axis: (C_in, B*L).
    h = jnp.concatenate([x_ref[b] for b in range(BATCH)], axis=1)

    row = 0
    for dilation in DILATIONS:                                   # three ResidualUnits
        # conv A: kernel 7, dilated, causal -> one fused matmul
        y = _elu(_fused_causal_conv(h, w_ref, row, IN_CHANNELS, RES_KERNEL,
                                    dilation, pad_ref, col_ref))
        row += IN_CHANNELS
        # conv B: kernel 1 -> the im2col operand is the activation itself
        w1 = w_ref[row:row + IN_CHANNELS, 0:IN_CHANNELS]
        b1 = w_ref[row:row + IN_CHANNELS, BIAS_COL:BIAS_COL + 1]
        y = _elu(jnp.dot(w1, y, preferred_element_type=jnp.float32) + b1)
        row += IN_CHANNELS
        h = y + h                                                # residual connection

    # Downsampling causal conv (kernel=2*stride, stride=STRIDE): stride-1 fused
    # conv, then select every STRIDE-th packed column with a 0/1 matmul.
    y = _fused_causal_conv(h, w_ref, row, OUT_CHANNELS, DOWN_KERNEL, 1,
                           pad_ref, col_ref)                     # (C_out, B*L)
    r = lax.broadcasted_iota(jnp.int32, (BATCH * L, BATCH * L_OUT), 0)
    c = lax.broadcasted_iota(jnp.int32, (BATCH * L, BATCH * L_OUT), 1)
    sel = (r == c * STRIDE).astype(jnp.float32)
    o_ref[...] = _elu(jnp.dot(y, sel, preferred_element_type=jnp.float32))


# ------------------------------- wrapper --------------------------------------
def pack_params(params):
    """Pack the 7 (weight, bias) pairs into one (32, 29) f32 slab.

    Weight rows use [o, k*C_in + ci] layout; the last column holds the bias.
    """
    blocks = []
    for w, b in zip(params[0::2], params[1::2]):
        c_out, c_in, k = w.shape
        wp = jnp.transpose(w, (0, 2, 1)).reshape(c_out, k * c_in)
        blk = jnp.zeros((c_out, SLAB_COLS), jnp.float32)
        blk = blk.at[:, :k * c_in].set(wp)
        blk = blk.at[:, BIAS_COL].set(b)
        blocks.append(blk)
    return jnp.concatenate(blocks, axis=0)          # (SLAB_ROWS, SLAB_COLS)


def encoder_block(x, params):
    B, C, Lx = x.shape
    assert (B, C, Lx) == (BATCH, IN_CHANNELS, SEQ_LEN)
    l_out = Lx // STRIDE
    w_slab = pack_params(params)

    out_packed = pl.pallas_call(
        encoder_block_kernel,
        out_shape=jax.ShapeDtypeStruct((OUT_CHANNELS, B * l_out), jnp.float32),
        in_specs=[pl.BlockSpec(memory_space=pltpu.MemorySpace.VMEM),
                  pl.BlockSpec(memory_space=pltpu.MemorySpace.VMEM)],
        out_specs=pl.BlockSpec(memory_space=pltpu.MemorySpace.VMEM),
        scratch_shapes=[
            pltpu.VMEM((IN_CHANNELS, B * SEG), jnp.float32),            # padded staging
            pltpu.VMEM((RES_KERNEL * IN_CHANNELS, B * Lx), jnp.float32),  # im2col
        ],
    )(x, w_slab)

    # Unpack the lane-packed (C_out, B*L_out) slab back to (B, C_out, L_out).
    return out_packed.reshape(OUT_CHANNELS, B, l_out).transpose(1, 0, 2)


# ----------------------- deterministic parameter init -------------------------
def init_params(key):
    ks = jax.random.split(key, 14)

    def w(k, shape):
        return (0.1 * jax.random.normal(k, shape)).astype(jnp.float32)

    params = []
    i = 0
    for _d in DILATIONS:                                   # three ResidualUnits
        params.append(w(ks[i], (IN_CHANNELS, IN_CHANNELS, RES_KERNEL))); i += 1  # conv k=7
        params.append(w(ks[i], (IN_CHANNELS,))); i += 1                          # bias
        params.append(w(ks[i], (IN_CHANNELS, IN_CHANNELS, 1))); i += 1           # conv k=1
        params.append(w(ks[i], (IN_CHANNELS,))); i += 1                          # bias
    params.append(w(ks[i], (OUT_CHANNELS, IN_CHANNELS, DOWN_KERNEL))); i += 1    # strided conv
    params.append(w(ks[i], (OUT_CHANNELS,))); i += 1                             # bias
    return params


# ------------------------- pure-JAX reference (check) --------------------------
def _ref_causal_conv(x, w, b, stride, dilation):
    # x: (B, C_in, L); w: torch layout (C_out, C_in, K)
    pad = dilation * (w.shape[2] - 1)
    xp = jnp.pad(x, ((0, 0), (0, 0), (pad, 0)))
    y = lax.conv_general_dilated(
        xp, w, window_strides=(stride,), padding="VALID",
        rhs_dilation=(dilation,), dimension_numbers=("NCH", "OIH", "NCH"))
    return y + b.reshape(1, -1, 1)


def encoder_block_ref(x, params):
    (w1a, b1a, w1b, b1b, w2a, b2a, w2b, b2b, w3a, b3a, w3b, b3b, wd, bd) = params

    def unit(h, wa, ba, wb, bb, d):
        y = jax.nn.elu(_ref_causal_conv(h, wa, ba, 1, d))
        y = jax.nn.elu(_ref_causal_conv(y, wb, bb, 1, 1))
        return y + h

    h = unit(x, w1a, b1a, w1b, b1b, 1)
    h = unit(h, w2a, b2a, w2b, b2b, 3)
    h = unit(h, w3a, b3a, w3b, b3b, 9)
    y = _ref_causal_conv(h, wd, bd, STRIDE, 1)
    return jax.nn.elu(y)


# ---------------------------------- main ---------------------------------------
if __name__ == "__main__":
    key = jax.random.PRNGKey(0)
    kx, kp = jax.random.split(key)
    x = jax.random.normal(kx, (BATCH, IN_CHANNELS, SEQ_LEN), dtype=jnp.float32)
    params = init_params(kp)

    out = jax.block_until_ready(encoder_block(x, params))
    ref = jax.block_until_ready(encoder_block_ref(x, params))

    assert out.shape == (BATCH, OUT_CHANNELS, SEQ_LEN // STRIDE), out.shape
    assert np.allclose(np.asarray(out), np.asarray(ref), atol=1e-4, rtol=1e-4)

    print("KERNEL_OK")
</pallas_src>

<mosaic_0001>
module attributes {stable_mosaic.version = 11 : i64} {
  func.func @encoder_block_kernel(%arg0: memref<2x4x16xf32, #tpu.memory_space<vmem>>, %arg1: memref<32x29xf32, #tpu.memory_space<vmem>>, %arg2: memref<8x16xf32, #tpu.memory_space<vmem>>, %arg3: memref<4x256xf32, #tpu.memory_space<vmem>>, %arg4: memref<28x32xf32, #tpu.memory_space<vmem>>) attributes {dimension_semantics = [], scalar_prefetch = 0 : i64, scratch_operands = 2 : i64, tpu.core_type = #tpu.core_type<tc>} {
    %cst = arith.constant 0.000000e+00 : f32
    %0 = vector.broadcast %cst : f32 to vector<4x256xf32>
    %c0 = arith.constant 0 : index
    %c0_0 = arith.constant 0 : index
    %1 = vector.load %arg3[%c0, %c0_0] : memref<4x256xf32, #tpu.memory_space<vmem>>, vector<4x256xf32>
    tpu.vector_store %arg3[%c0, %c0_0], %0 {strides = array<i32>} : memref<4x256xf32, #tpu.memory_space<vmem>>, vector<4x256xf32>,
    %c0_1 = arith.constant 0 : index
    %c0_2 = arith.constant 0 : index
    %c0_3 = arith.constant 0 : index
    %2 = vector.load %arg0[%c0_1, %c0_2, %c0_3] : memref<2x4x16xf32, #tpu.memory_space<vmem>>, vector<1x4x16xf32>
    %3 = vector.shape_cast %2 : vector<1x4x16xf32> to vector<4x16xf32>
    %c1 = arith.constant 1 : index
    %c0_4 = arith.constant 0 : index
    %c0_5 = arith.constant 0 : index
    %4 = vector.load %arg0[%c1, %c0_4, %c0_5] : memref<2x4x16xf32, #tpu.memory_space<vmem>>, vector<1x4x16xf32>
    %5 = vector.shape_cast %4 : vector<1x4x16xf32> to vector<4x16xf32>
    %6 = tpu.concatenate %3, %5 in 1 : vector<4x16xf32>, vector<4x16xf32> -> vector<4x32xf32>
    %7 = vector.extract_strided_slice %6 {offsets = [0, 0], sizes = [4, 16], strides = [1, 1]} : vector<4x32xf32> to vector<4x16xf32>
    %c0_6 = arith.constant 0 : index
    %c54 = arith.constant 54 : index
    %8 = vector.load %arg3[%c0_6, %c54] : memref<4x256xf32, #tpu.memory_space<vmem>>, vector<4x16xf32>
    tpu.vector_store %arg3[%c0_6, %c54], %7 {strides = array<i32>} : memref<4x256xf32, #tpu.memory_space<vmem>>, vector<4x16xf32>,
    %9 = vector.extract_strided_slice %6 {offsets = [0, 16], sizes = [4, 16], strides = [1, 1]} : vector<4x32xf32> to vector<4x16xf32>
    %c0_7 = arith.constant 0 : index
    %c182 = arith.constant 182 : index
    %10 = vector.load %arg3[%c0_7, %c182] : memref<4x256xf32, #tpu.memory_space<vmem>>, vector<4x16xf32>
    tpu.vector_store %arg3[%c0_7, %c182], %9 {strides = array<i32>} : memref<4x256xf32, #tpu.memory_space<vmem>>, vector<4x16xf32>,
    %c0_8 = arith.constant 0 : index
    %c48 = arith.constant 48 : index
    %11 = vector.load %arg3[%c0_8, %c48] : memref<4x256xf32, #tpu.memory_space<vmem>>, vector<4x16xf32>
    %c0_9 = arith.constant 0 : index
    %c0_10 = arith.constant 0 : index
    %12 = vector.load %arg4[%c0_9, %c0_10] : memref<28x32xf32, #tpu.memory_space<vmem>>, vector<4x16xf32>
    tpu.vector_store %arg4[%c0_9, %c0_10], %11 {strides = array<i32>} : memref<28x32xf32, #tpu.memory_space<vmem>>, vector<4x16xf32>,
    %c0_11 = arith.constant 0 : index
    %c176 = arith.constant 176 : index
    %13 = vector.load %arg3[%c0_11, %c176] : memref<4x256xf32, #tpu.memory_space<vmem>>, vector<4x16xf32>
    %c0_12 = arith.constant 0 : index
    %c16 = arith.constant 16 : index
    %14 = vector.load %arg4[%c0_12, %c16] : memref<28x32xf32, #tpu.memory_space<vmem>>, vector<4x16xf32>
    tpu.vector_store %arg4[%c0_12, %c16], %13 {strides = array<i32>} : memref<28x32xf32, #tpu.memory_space<vmem>>, vector<4x16xf32>,
    %c0_13 = arith.constant 0 : index
    %c49 = arith.constant 49 : index
    %15 = vector.load %arg3[%c0_13, %c49] : memref<4x256xf32, #tpu.memory_space<vmem>>, vector<4x16xf32>
    %c4 = arith.constant 4 : index
    %c0_14 = arith.constant 0 : index
    %16 = vector.load %arg4[%c4, %c0_14] : memref<28x32xf32, #tpu.memory_space<vmem>>, vector<4x16xf32>
    tpu.vector_store %arg4[%c4, %c0_14], %15 {strides = array<i32>} : memref<28x32xf32, #tpu.memory_space<vmem>>, vector<4x16xf32>,
    %c0_15 = arith.constant 0 : index
    %c177 = arith.constant 177 : index
    %17 = vector.load %arg3[%c0_15, %c177] : memref<4x256xf32, #tpu.memory_space<vmem>>, vector<4x16xf32>
    %c4_16 = arith.constant 4 : index
    %c16_17 = arith.constant 16 : index
    %18 = vector.load %arg4[%c4_16, %c16_17] : memref<28x32xf32, #tpu.memory_space<vmem>>, vector<4x16xf32>
    tpu.vector_store %arg4[%c4_16, %c16_17], %17 {strides = array<i32>} : memref<28x32xf32, #tpu.memory_space<vmem>>, vector<4x16xf32>,
    %c0_18 = arith.constant 0 : index
    %c50 = arith.constant 50 : index
    %19 = vector.load %arg3[%c0_18, %c50] : memref<4x256xf32, #tpu.memory_space<vmem>>, vector<4x16xf32>
    %c8 = arith.constant 8 : index
    %c0_19 = arith.constant 0 : index
    %20 = vector.load %arg4[%c8, %c0_19] : memref<28x32xf32, #tpu.memory_space<vmem>>, vector<4x16xf32>
    tpu.vector_store %arg4[%c8, %c0_19], %19 {strides = array<i32>} : memref<28x32xf32, #tpu.memory_space<vmem>>, vector<4x16xf32>,
    %c0_20 = arith.constant 0 : index
    %c178 = arith.constant 178 : index
    %21 = vector.load %arg3[%c0_20, %c178] : memref<4x256xf32, #tpu.memory_space<vmem>>, vector<4x16xf32>
    %c8_21 = arith.constant 8 : index
    %c16_22 = arith.constant 16 : index
    %22 = vector.load %arg4[%c8_21, %c16_22] : memref<28x32xf32, #tpu.memory_space<vmem>>, vector<4x16xf32>
    tpu.vector_store %arg4[%c8_21, %c16_22], %21 {strides = array<i32>} : memref<28x32xf32, #tpu.memory_space<vmem>>, vector<4x16xf32>,
    %c0_23 = arith.constant 0 : index
    %c51 = arith.constant 51 : index
    %23 = vector.load %arg3[%c0_23, %c51] : memref<4x256xf32, #tpu.memory_space<vmem>>, vector<4x16xf32>
    %c12 = arith.constant 12 : index
    %c0_24 = arith.constant 0 : index
    %24 = vector.load %arg4[%c12, %c0_24] : memref<28x32xf32, #tpu.memory_space<vmem>>, vector<4x16xf32>
    tpu.vector_store %arg4[%c12, %c0_24], %23 {strides = array<i32>} : memref<28x32xf32, #tpu.memory_space<vmem>>, vector<4x16xf32>,
    %c0_25 = arith.constant 0 : index
    %c179 = arith.constant 179 : index
    %25 = vector.load %arg3[%c0_25, %c179] : memref<4x256xf32, #tpu.memory_space<vmem>>, vector<4x16xf32>
    %c12_26 = arith.constant 12 : index
    %c16_27 = arith.constant 16 : index
    %26 = vector.load %arg4[%c12_26, %c16_27] : memref<28x32xf32, #tpu.memory_space<vmem>>, vector<4x16xf32>
    tpu.vector_store %arg4[%c12_26, %c16_27], %25 {strides = array<i32>} : memref<28x32xf32, #tpu.memory_space<vmem>>, vector<4x16xf32>,
    %c0_28 = arith.constant 0 : index
    %c52 = arith.constant 52 : index
    %27 = vector.load %arg3[%c0_28, %c52] : memref<4x256xf32, #tpu.memory_space<vmem>>, vector<4x16xf32>
    %c16_29 = arith.constant 16 : index
    %c0_30 = arith.constant 0 : index
    %28 = vector.load %arg4[%c16_29, %c0_30] : memref<28x32xf32, #tpu.memory_space<vmem>>, vector<4x16xf32>
    tpu.vector_store %arg4[%c16_29, %c0_30], %27 {strides = array<i32>} : memref<28x32xf32, #tpu.memory_space<vmem>>, vector<4x16xf32>,
    %c0_31 = arith.constant 0 : index
    %c180 = arith.constant 180 : index
    %29 = vector.load %arg3[%c0_31, %c180] : memref<4x256xf32, #tpu.memory_space<vmem>>, vector<4x16xf32>
    %c16_32 = arith.constant 16 : index
    %c16_33 = arith.constant 16 : index
    %30 = vector.load %arg4[%c16_32, %c16_33] : memref<28x32xf32, #tpu.memory_space<vmem>>, vector<4x16xf32>
    tpu.vector_store %arg4[%c16_32, %c16_33], %29 {strides = array<i32>} : memref<28x32xf32, #tpu.memory_space<vmem>>, vector<4x16xf32>,
    %c0_34 = arith.constant 0 : index
    %c53 = arith.constant 53 : index
    %31 = vector.load %arg3[%c0_34, %c53] : memref<4x256xf32, #tpu.memory_space<vmem>>, vector<4x16xf32>
    %c20 = arith.constant 20 : index
    %c0_35 = arith.constant 0 : index
    %32 = vector.load %arg4[%c20, %c0_35] : memref<28x32xf32, #tpu.memory_space<vmem>>, vector<4x16xf32>
    tpu.vector_store %arg4[%c20, %c0_35], %31 {strides = array<i32>} : memref<28x32xf32, #tpu.memory_space<vmem>>, vector<4x16xf32>,
    %c0_36 = arith.constant 0 : index
    %c181 = arith.constant 181 : index
    %33 = vector.load %arg3[%c0_36, %c181] : memref<4x256xf32, #tpu.memory_space<vmem>>, vector<4x16xf32>
    %c20_37 = arith.constant 20 : index
    %c16_38 = arith.constant 16 : index
    %34 = vector.load %arg4[%c20_37, %c16_38] : memref<28x32xf32, #tpu.memory_space<vmem>>, vector<4x16xf32>
    tpu.vector_store %arg4[%c20_37, %c16_38], %33 {strides = array<i32>} : memref<28x32xf32, #tpu.memory_space<vmem>>, vector<4x16xf32>,
    %c0_39 = arith.constant 0 : index
    %c54_40 = arith.constant 54 : index
    %35 = vector.load %arg3[%c0_39, %c54_40] : memref<4x256xf32, #tpu.memory_space<vmem>>, vector<4x16xf32>
    %c24 = arith.constant 24 : index
    %c0_41 = arith.constant 0 : index
    %36 = vector.load %arg4[%c24, %c0_41] : memref<28x32xf32, #tpu.memory_space<vmem>>, vector<4x16xf32>
    tpu.vector_store %arg4[%c24, %c0_41], %35 {strides = array<i32>} : memref<28x32xf32, #tpu.memory_space<vmem>>, vector<4x16xf32>,
    %c0_42 = arith.constant 0 : index
    %c182_43 = arith.constant 182 : index
    %37 = vector.load %arg3[%c0_42, %c182_43] : memref<4x256xf32, #tpu.memory_space<vmem>>, vector<4x16xf32>
    %c24_44 = arith.constant 24 : index
    %c16_45 = arith.constant 16 : index
    %38 = vector.load %arg4[%c24_44, %c16_45] : memref<28x32xf32, #tpu.memory_space<vmem>>, vector<4x16xf32>
    tpu.vector_store %arg4[%c24_44, %c16_45], %37 {strides = array<i32>} : memref<28x32xf32, #tpu.memory_space<vmem>>, vector<4x16xf32>,
    %c0_46 = arith.constant 0 : index
    %c0_47 = arith.constant 0 : index
    %39 = vector.load %arg4[%c0_46, %c0_47] : memref<28x32xf32, #tpu.memory_space<vmem>>, vector<28x32xf32>
    %c0_48 = arith.constant 0 : index
    %c0_49 = arith.constant 0 : index
    %40 = vector.load %arg1[%c0_48, %c0_49] : memref<32x29xf32, #tpu.memory_space<vmem>>, vector<4x28xf32>
    %c0_50 = arith.constant 0 : index
    %c28 = arith.constant 28 : index
    %41 = vector.load %arg1[%c0_50, %c28] : memref<32x29xf32, #tpu.memory_space<vmem>>, vector<4x1xf32>
    %cst_51 = arith.constant dense<0.000000e+00> : vector<4x32xf32>
    %42 = tpu.matmul %40, %39, %cst_51 {dimension_numbers = #tpu.dot_dimension_numbers<[1], [0], [0], [1], [0, 0, 1, 1], [], []>} : vector<4x28xf32>, vector<28x32xf32>, vector<4x32xf32> -> vector<4x32xf32>
    %43 = vector.broadcast %41 : vector<4x1xf32> to vector<4x32xf32>
    %44 = arith.addf %42, %43 : vector<4x32xf32>
    %cst_52 = arith.constant 0.000000e+00 : f32
    %45 = vector.broadcast %cst_52 : f32 to vector<4x32xf32>
    %46 = arith.cmpf ogt, %44, %45 : vector<4x32xf32>
    %cst_53 = arith.constant 0.000000e+00 : f32
    %47 = vector.broadcast %cst_53 : f32 to vector<4x32xf32>
    %48 = arith.minimumf %44, %47 : vector<4x32xf32>
    %49 = math.exp %48 : vector<4x32xf32>
    %cst_54 = arith.constant 1.000000e+00 : f32
    %50 = vector.broadcast %cst_54 : f32 to vector<4x32xf32>
    %51 = arith.subf %49, %50 : vector<4x32xf32>
    %52 = arith.select %46, %44, %51 : vector<4x32xi1>, vector<4x32xf32>
    %c4_55 = arith.constant 4 : index
    %c0_56 = arith.constant 0 : index
    %53 = vector.load %arg1[%c4_55, %c0_56] : memref<32x29xf32, #tpu.memory_space<vmem>>, vector<4x4xf32>
    %c4_57 = arith.constant 4 : index
    %c28_58 = arith.constant 28 : index
    %54 = vector.load %arg1[%c4_57, %c28_58] : memref<32x29xf32, #tpu.memory_space<vmem>>, vector<4x1xf32>
    %cst_59 = arith.constant dense<0.000000e+00> : vector<4x32xf32>
    %55 = tpu.matmul %53, %52, %cst_59 {dimension_numbers = #tpu.dot_dimension_numbers<[1], [0], [0], [1], [0, 0, 1, 1], [], []>} : vector<4x4xf32>, vector<4x32xf32>, vector<4x32xf32> -> vector<4x32xf32>
    %56 = vector.broadcast %54 : vector<4x1xf32> to vector<4x32xf32>
    %57 = arith.addf %55, %56 : vector<4x32xf32>
    %cst_60 = arith.constant 0.000000e+00 : f32
    %58 = vector.broadcast %cst_60 : f32 to vector<4x32xf32>
    %59 = arith.cmpf ogt, %57, %58 : vector<4x32xf32>
    %cst_61 = arith.constant 0.000000e+00 : f32
    %60 = vector.broadcast %cst_61 : f32 to vector<4x32xf32>
    %61 = arith.minimumf %57, %60 : vector<4x32xf32>
    %62 = math.exp %61 : vector<4x32xf32>
    %cst_62 = arith.constant 1.000000e+00 : f32
    %63 = vector.broadcast %cst_62 : f32 to vector<4x32xf32>
    %64 = arith.subf %62, %63 : vector<4x32xf32>
    %65 = arith.select %59, %57, %64 : vector<4x32xi1>, vector<4x32xf32>
    %66 = arith.addf %65, %6 : vector<4x32xf32>
    %67 = vector.extract_strided_slice %66 {offsets = [0, 0], sizes = [4, 16], strides = [1, 1]} : vector<4x32xf32> to vector<4x16xf32>
    %c0_63 = arith.constant 0 : index
    %c54_64 = arith.constant 54 : index
    %68 = vector.load %arg3[%c0_63, %c54_64] : memref<4x256xf32, #tpu.memory_space<vmem>>, vector<4x16xf32>
    tpu.vector_store %arg3[%c0_63, %c54_64], %67 {strides = array<i32>} : memref<4x256xf32, #tpu.memory_space<vmem>>, vector<4x16xf32>,
    %69 = vector.extract_strided_slice %66 {offsets = [0, 16], sizes = [4, 16], strides = [1, 1]} : vector<4x32xf32> to vector<4x16xf32>
    %c0_65 = arith.constant 0 : index
    %c182_66 = arith.constant 182 : index
    %70 = vector.load %arg3[%c0_65, %c182_66] : memref<4x256xf32, #tpu.memory_space<vmem>>, vector<4x16xf32>
    tpu.vector_store %arg3[%c0_65, %c182_66], %69 {strides = array<i32>} : memref<4x256xf32, #tpu.memory_space<vmem>>, vector<4x16xf32>,
    %c0_67 = arith.constant 0 : index
    %c36 = arith.constant 36 : index
    %71 = vector.load %arg3[%c0_67, %c36] : memref<4x256xf32, #tpu.memory_space<vmem>>, vector<4x16xf32>
    %c0_68 = arith.constant 0 : index
    %c0_69 = arith.constant 0 : index
    %72 = vector.load %arg4[%c0_68, %c0_69] : memref<28x32xf32, #tpu.memory_space<vmem>>, vector<4x16xf32>
    tpu.vector_store %arg4[%c0_68, %c0_69], %71 {strides = array<i32>} : memref<28x32xf32, #tpu.memory_space<vmem>>, vector<4x16xf32>,
    %c0_70 = arith.constant 0 : index
    %c164 = arith.constant 164 : index
    %73 = vector.load %arg3[%c0_70, %c164] : memref<4x256xf32, #tpu.memory_space<vmem>>, vector<4x16xf32>
    %c0_71 = arith.constant 0 : index
    %c16_72 = arith.constant 16 : index
    %74 = vector.load %arg4[%c0_71, %c16_72] : memref<28x32xf32, #tpu.memory_space<vmem>>, vector<4x16xf32>
    tpu.vector_store %arg4[%c0_71, %c16_72], %73 {strides = array<i32>} : memref<28x32xf32, #tpu.memory_space<vmem>>, vector<4x16xf32>,
    %c0_73 = arith.constant 0 : index
    %c39 = arith.constant 39 : index
    %75 = vector.load %arg3[%c0_73, %c39] : memref<4x256xf32, #tpu.memory_space<vmem>>, vector<4x16xf32>
    %c4_74 = arith.constant 4 : index
    %c0_75 = arith.constant 0 : index
    %76 = vector.load %arg4[%c4_74, %c0_75] : memref<28x32xf32, #tpu.memory_space<vmem>>, vector<4x16xf32>
    tpu.vector_store %arg4[%c4_74, %c0_75], %75 {strides = array<i32>} : memref<28x32xf32, #tpu.memory_space<vmem>>, vector<4x16xf32>,
    %c0_76 = arith.constant 0 : index
    %c167 = arith.constant 167 : index
    %77 = vector.load %arg3[%c0_76, %c167] : memref<4x256xf32, #tpu.memory_space<vmem>>, vector<4x16xf32>
    %c4_77 = arith.constant 4 : index
    %c16_78 = arith.constant 16 : index
    %78 = vector.load %arg4[%c4_77, %c16_78] : memref<28x32xf32, #tpu.memory_space<vmem>>, vector<4x16xf32>
    tpu.vector_store %arg4[%c4_77, %c16_78], %77 {strides = array<i32>} : memref<28x32xf32, #tpu.memory_space<vmem>>, vector<4x16xf32>,
    %c0_79 = arith.constant 0 : index
    %c42 = arith.constant 42 : index
    %79 = vector.load %arg3[%c0_79, %c42] : memref<4x256xf32, #tpu.memory_space<vmem>>, vector<4x16xf32>
    %c8_80 = arith.constant 8 : index
    %c0_81 = arith.constant 0 : index
    %80 = vector.load %arg4[%c8_80, %c0_81] : memref<28x32xf32, #tpu.memory_space<vmem>>, vector<4x16xf32>
    tpu.vector_store %arg4[%c8_80, %c0_81], %79 {strides = array<i32>} : memref<28x32xf32, #tpu.memory_space<vmem>>, vector<4x16xf32>,
    %c0_82 = arith.constant 0 : index
    %c170 = arith.constant 170 : index
    %81 = vector.load %arg3[%c0_82, %c170] : memref<4x256xf32, #tpu.memory_space<vmem>>, vector<4x16xf32>
    %c8_83 = arith.constant 8 : index
    %c16_84 = arith.constant 16 : index
    %82 = vector.load %arg4[%c8_83, %c16_84] : memref<28x32xf32, #tpu.memory_space<vmem>>, vector<4x16xf32>
    tpu.vector_store %arg4[%c8_83, %c16_84], %81 {strides = array<i32>} : memref<28x32xf32, #tpu.memory_space<vmem>>, vector<4x16xf32>,
    %c0_85 = arith.constant 0 : index
    %c45 = arith.constant 45 : index
    %83 = vector.load %arg3[%c0_85, %c45] : memref<4x256xf32, #tpu.memory_space<vmem>>, vector<4x16xf32>
    %c12_86 = arith.constant 12 : index
    %c0_87 = arith.constant 0 : index
    %84 = vector.load %arg4[%c12_86, %c0_87] : memref<28x32xf32, #tpu.memory_space<vmem>>, vector<4x16xf32>
    tpu.vector_store %arg4[%c12_86, %c0_87], %83 {strides = array<i32>} : memref<28x32xf32, #tpu.memory_space<vmem>>, vector<4x16xf32>,
    %c0_88 = arith.constant 0 : index
    %c173 = arith.constant 173 : index
    %85 = vector.load %arg3[%c0_88, %c173] : memref<4x256xf32, #tpu.memory_space<vmem>>, vector<4x16xf32>
    %c12_89 = arith.constant 12 : index
    %c16_90 = arith.constant 16 : index
    %86 = vector.load %arg4[%c12_89, %c16_90] : memref<28x32xf32, #tpu.memory_space<vmem>>, vector<4x16xf32>
    tpu.vector_store %arg4[%c12_89, %c16_90], %85 {strides = array<i32>} : memref<28x32xf32, #tpu.memory_space<vmem>>, vector<4x16xf32>,
    %c0_91 = arith.constant 0 : index
    %c48_92 = arith.constant 48 : index
    %87 = vector.load %arg3[%c0_91, %c48_92] : memref<4x256xf32, #tpu.memory_space<vmem>>, vector<4x16xf32>
    %c16_93 = arith.constant 16 : index
    %c0_94 = arith.constant 0 : index
    %88 = vector.load %arg4[%c16_93, %c0_94] : memref<28x32xf32, #tpu.memory_space<vmem>>, vector<4x16xf32>
    tpu.vector_store %arg4[%c16_93, %c0_94], %87 {strides = array<i32>} : memref<28x32xf32, #tpu.memory_space<vmem>>, vector<4x16xf32>,
    %c0_95 = arith.constant 0 : index
    %c176_96 = arith.constant 176 : index
    %89 = vector.load %arg3[%c0_95, %c176_96] : memref<4x256xf32, #tpu.memory_space<vmem>>, vector<4x16xf32>
    %c16_97 = arith.constant 16 : index
    %c16_98 = arith.constant 16 : index
    %90 = vector.load %arg4[%c16_97, %c16_98] : memref<28x32xf32, #tpu.memory_space<vmem>>, vector<4x16xf32>
    tpu.vector_store %arg4[%c16_97, %c16_98], %89 {strides = array<i32>} : memref<28x32xf32, #tpu.memory_space<vmem>>, vector<4x16xf32>,
    %c0_99 = arith.constant 0 : index
    %c51_100 = arith.constant 51 : index
    %91 = vector.load %arg3[%c0_99, %c51_100] : memref<4x256xf32, #tpu.memory_space<vmem>>, vector<4x16xf32>
    %c20_101 = arith.constant 20 : index
    %c0_102 = arith.constant 0 : index
    %92 = vector.load %arg4[%c20_101, %c0_102] : memref<28x32xf32, #tpu.memory_space<vmem>>, vector<4x16xf32>
    tpu.vector_store %arg4[%c20_101, %c0_102], %91 {strides = array<i32>} : memref<28x32xf32, #tpu.memory_space<vmem>>, vector<4x16xf32>,
    %c0_103 = arith.constant 0 : index
    %c179_104 = arith.constant 179 : index
    %93 = vector.load %arg3[%c0_103, %c179_104] : memref<4x256xf32, #tpu.memory_space<vmem>>, vector<4x16xf32>
    %c20_105 = arith.constant 20 : index
    %c16_106 = arith.constant 16 : index
    %94 = vector.load %arg4[%c20_105, %c16_106] : memref<28x32xf32, #tpu.memory_space<vmem>>, vector<4x16xf32>
    tpu.vector_store %arg4[%c20_105, %c16_106], %93 {strides = array<i32>} : memref<28x32xf32, #tpu.memory_space<vmem>>, vector<4x16xf32>,
    %c0_107 = arith.constant 0 : index
    %c54_108 = arith.constant 54 : index
    %95 = vector.load %arg3[%c0_107, %c54_108] : memref<4x256xf32, #tpu.memory_space<vmem>>, vector<4x16xf32>
    %c24_109 = arith.constant 24 : index
    %c0_110 = arith.constant 0 : index
    %96 = vector.load %arg4[%c24_109, %c0_110] : memref<28x32xf32, #tpu.memory_space<vmem>>, vector<4x16xf32>
    tpu.vector_store %arg4[%c24_109, %c0_110], %95 {strides = array<i32>} : memref<28x32xf32, #tpu.memory_space<vmem>>, vector<4x16xf32>,
    %c0_111 = arith.constant 0 : index
    %c182_112 = arith.constant 182 : index
    %97 = vector.load %arg3[%c0_111, %c182_112] : memref<4x256xf32, #tpu.memory_space<vmem>>, vector<4x16xf32>
    %c24_113 = arith.constant 24 : index
    %c16_114 = arith.constant 16 : index
    %98 = vector.load %arg4[%c24_113, %c16_114] : memref<28x32xf32, #tpu.memory_space<vmem>>, vector<4x16xf32>
    tpu.vector_store %arg4[%c24_113, %c16_114], %97 {strides = array<i32>} : memref<28x32xf32, #tpu.memory_space<vmem>>, vector<4x16xf32>,
    %c0_115 = arith.constant 0 : index
    %c0_116 = arith.constant 0 : index
    %99 = vector.load %arg4[%c0_115, %c0_116] : memref<28x32xf32, #tpu.memory_space<vmem>>, vector<28x32xf32>
    %c8_117 = arith.constant 8 : index
    %c0_118 = arith.constant 0 : index
    %100 = vector.load %arg1[%c8_117, %c0_118] : memref<32x29xf32, #tpu.memory_space<vmem>>, vector<4x28xf32>
    %c8_119 = arith.constant 8 : index
    %c28_120 = arith.constant 28 : index
    %101 = vector.load %arg1[%c8_119, %c28_120] : memref<32x29xf32, #tpu.memory_space<vmem>>, vector<4x1xf32>
    %cst_121 = arith.constant dense<0.000000e+00> : vector<4x32xf32>
    %102 = tpu.matmul %100, %99, %cst_121 {dimension_numbers = #tpu.dot_dimension_numbers<[1], [0], [0], [1], [0, 0, 1, 1], [], []>} : vector<4x28xf32>, vector<28x32xf32>, vector<4x32xf32> -> vector<4x32xf32>
    %103 = vector.broadcast %101 : vector<4x1xf32> to vector<4x32xf32>
    %104 = arith.addf %102, %103 : vector<4x32xf32>
    %cst_122 = arith.constant 0.000000e+00 : f32
    %105 = vector.broadcast %cst_122 : f32 to vector<4x32xf32>
    %106 = arith.cmpf ogt, %104, %105 : vector<4x32xf32>
    %cst_123 = arith.constant 0.000000e+00 : f32
    %107 = vector.broadcast %cst_123 : f32 to vector<4x32xf32>
    %108 = arith.minimumf %104, %107 : vector<4x32xf32>
    %109 = math.exp %108 : vector<4x32xf32>
    %cst_124 = arith.constant 1.000000e+00 : f32
    %110 = vector.broadcast %cst_124 : f32 to vector<4x32xf32>
    %111 = arith.subf %109, %110 : vector<4x32xf32>
    %112 = arith.select %106, %104, %111 : vector<4x32xi1>, vector<4x32xf32>
    %c12_125 = arith.constant 12 : index
    %c0_126 = arith.constant 0 : index
    %113 = vector.load %arg1[%c12_125, %c0_126] : memref<32x29xf32, #tpu.memory_space<vmem>>, vector<4x4xf32>
    %c12_127 = arith.constant 12 : index
    %c28_128 = arith.constant 28 : index
    %114 = vector.load %arg1[%c12_127, %c28_128] : memref<32x29xf32, #tpu.memory_space<vmem>>, vector<4x1xf32>
    %cst_129 = arith.constant dense<0.000000e+00> : vector<4x32xf32>
    %115 = tpu.matmul %113, %112, %cst_129 {dimension_numbers = #tpu.dot_dimension_numbers<[1], [0], [0], [1], [0, 0, 1, 1], [], []>} : vector<4x4xf32>, vector<4x32xf32>, vector<4x32xf32> -> vector<4x32xf32>
    %116 = vector.broadcast %114 : vector<4x1xf32> to vector<4x32xf32>
    %117 = arith.addf %115, %116 : vector<4x32xf32>
    %cst_130 = arith.constant 0.000000e+00 : f32
    %118 = vector.broadcast %cst_130 : f32 to vector<4x32xf32>
    %119 = arith.cmpf ogt, %117, %118 : vector<4x32xf32>
    %cst_131 = arith.constant 0.000000e+00 : f32
    %120 = vector.broadcast %cst_131 : f32 to vector<4x32xf32>
    %121 = arith.minimumf %117, %120 : vector<4x32xf32>
    %122 = math.exp %121 : vector<4x32xf32>
    %cst_132 = arith.constant 1.000000e+00 : f32
    %123 = vector.broadcast %cst_132 : f32 to vector<4x32xf32>
    %124 = arith.subf %122, %123 : vector<4x32xf32>
    %125 = arith.select %119, %117, %124 : vector<4x32xi1>, vector<4x32xf32>
    %126 = arith.addf %125, %66 : vector<4x32xf32>
    %127 = vector.extract_strided_slice %126 {offsets = [0, 0], sizes = [4, 16], strides = [1, 1]} : vector<4x32xf32> to vector<4x16xf32>
    %c0_133 = arith.constant 0 : index
    %c54_134 = arith.constant 54 : index
    %128 = vector.load %arg3[%c0_133, %c54_134] : memref<4x256xf32, #tpu.memory_space<vmem>>, vector<4x16xf32>
    tpu.vector_store %arg3[%c0_133, %c54_134], %127 {strides = array<i32>} : memref<4x256xf32, #tpu.memory_space<vmem>>, vector<4x16xf32>,
    %129 = vector.extract_strided_slice %126 {offsets = [0, 16], sizes = [4, 16], strides = [1, 1]} : vector<4x32xf32> to vector<4x16xf32>
    %c0_135 = arith.constant 0 : index
    %c182_136 = arith.constant 182 : index
    %130 = vector.load %arg3[%c0_135, %c182_136] : memref<4x256xf32, #tpu.memory_space<vmem>>, vector<4x16xf32>
    tpu.vector_store %arg3[%c0_135, %c182_136], %129 {strides = array<i32>} : memref<4x256xf32, #tpu.memory_space<vmem>>, vector<4x16xf32>,
    %c0_137 = arith.constant 0 : index
    %c0_138 = arith.constant 0 : index
    %131 = vector.load %arg3[%c0_137, %c0_138] : memref<4x256xf32, #tpu.memory_space<vmem>>, vector<4x16xf32>
    %c0_139 = arith.constant 0 : index
    %c0_140 = arith.constant 0 : index
    %132 = vector.load %arg4[%c0_139, %c0_140] : memref<28x32xf32, #tpu.memory_space<vmem>>, vector<4x16xf32>
    tpu.vector_store %arg4[%c0_139, %c0_140], %131 {strides = array<i32>} : memref<28x32xf32, #tpu.memory_space<vmem>>, vector<4x16xf32>,
    %c0_141 = arith.constant 0 : index
    %c128 = arith.constant 128 : index
    %133 = vector.load %arg3[%c0_141, %c128] : memref<4x256xf32, #tpu.memory_space<vmem>>, vector<4x16xf32>
    %c0_142 = arith.constant 0 : index
    %c16_143 = arith.constant 16 : index
    %134 = vector.load %arg4[%c0_142, %c16_143] : memref<28x32xf32, #tpu.memory_space<vmem>>, vector<4x16xf32>
    tpu.vector_store %arg4[%c0_142, %c16_143], %133 {strides = array<i32>} : memref<28x32xf32, #tpu.memory_space<vmem>>, vector<4x16xf32>,
    %c0_144 = arith.constant 0 : index
    %c9 = arith.constant 9 : index
    %135 = vector.load %arg3[%c0_144, %c9] : memref<4x256xf32, #tpu.memory_space<vmem>>, vector<4x16xf32>
    %c4_145 = arith.constant 4 : index
    %c0_146 = arith.constant 0 : index
    %136 = vector.load %arg4[%c4_145, %c0_146] : memref<28x32xf32, #tpu.memory_space<vmem>>, vector<4x16xf32>
    tpu.vector_store %arg4[%c4_145, %c0_146], %135 {strides = array<i32>} : memref<28x32xf32, #tpu.memory_space<vmem>>, vector<4x16xf32>,
    %c0_147 = arith.constant 0 : index
    %c137 = arith.constant 137 : index
    %137 = vector.load %arg3[%c0_147, %c137] : memref<4x256xf32, #tpu.memory_space<vmem>>, vector<4x16xf32>
    %c4_148 = arith.constant 4 : index
    %c16_149 = arith.constant 16 : index
    %138 = vector.load %arg4[%c4_148, %c16_149] : memref<28x32xf32, #tpu.memory_space<vmem>>, vector<4x16xf32>
    tpu.vector_store %arg4[%c4_148, %c16_149], %137 {strides = array<i32>} : memref<28x32xf32, #tpu.memory_space<vmem>>, vector<4x16xf32>,
    %c0_150 = arith.constant 0 : index
    %c18 = arith.constant 18 : index
    %139 = vector.load %arg3[%c0_150, %c18] : memref<4x256xf32, #tpu.memory_space<vmem>>, vector<4x16xf32>
    %c8_151 = arith.constant 8 : index
    %c0_152 = arith.constant 0 : index
    %140 = vector.load %arg4[%c8_151, %c0_152] : memref<28x32xf32, #tpu.memory_space<vmem>>, vector<4x16xf32>
    tpu.vector_store %arg4[%c8_151, %c0_152], %139 {strides = array<i32>} : memref<28x32xf32, #tpu.memory_space<vmem>>, vector<4x16xf32>,
    %c0_153 = arith.constant 0 : index
    %c146 = arith.constant 146 : index
    %141 = vector.load %arg3[%c0_153, %c146] : memref<4x256xf32, #tpu.memory_space<vmem>>, vector<4x16xf32>
    %c8_154 = arith.constant 8 : index
    %c16_155 = arith.constant 16 : index
    %142 = vector.load %arg4[%c8_154, %c16_155] : memref<28x32xf32, #tpu.memory_space<vmem>>, vector<4x16xf32>
    tpu.vector_store %arg4[%c8_154, %c16_155], %141 {strides = array<i32>} : memref<28x32xf32, #tpu.memory_space<vmem>>, vector<4x16xf32>,
    %c0_156 = arith.constant 0 : index
    %c27 = arith.constant 27 : index
    %143 = vector.load %arg3[%c0_156, %c27] : memref<4x256xf32, #tpu.memory_space<vmem>>, vector<4x16xf32>
    %c12_157 = arith.constant 12 : index
    %c0_158 = arith.constant 0 : index
    %144 = vector.load %arg4[%c12_157, %c0_158] : memref<28x32xf32, #tpu.memory_space<vmem>>, vector<4x16xf32>
    tpu.vector_store %arg4[%c12_157, %c0_158], %143 {strides = array<i32>} : memref<28x32xf32, #tpu.memory_space<vmem>>, vector<4x16xf32>,
    %c0_159 = arith.constant 0 : index
    %c155 = arith.constant 155 : index
    %145 = vector.load %arg3[%c0_159, %c155] : memref<4x256xf32, #tpu.memory_space<vmem>>, vector<4x16xf32>
    %c12_160 = arith.constant 12 : index
    %c16_161 = arith.constant 16 : index
    %146 = vector.load %arg4[%c12_160, %c16_161] : memref<28x32xf32, #tpu.memory_space<vmem>>, vector<4x16xf32>
    tpu.vector_store %arg4[%c12_160, %c16_161], %145 {strides = array<i32>} : memref<28x32xf32, #tpu.memory_space<vmem>>, vector<4x16xf32>,
    %c0_162 = arith.constant 0 : index
    %c36_163 = arith.constant 36 : index
    %147 = vector.load %arg3[%c0_162, %c36_163] : memref<4x256xf32, #tpu.memory_space<vmem>>, vector<4x16xf32>
    %c16_164 = arith.constant 16 : index
    %c0_165 = arith.constant 0 : index
    %148 = vector.load %arg4[%c16_164, %c0_165] : memref<28x32xf32, #tpu.memory_space<vmem>>, vector<4x16xf32>
    tpu.vector_store %arg4[%c16_164, %c0_165], %147 {strides = array<i32>} : memref<28x32xf32, #tpu.memory_space<vmem>>, vector<4x16xf32>,
    %c0_166 = arith.constant 0 : index
    %c164_167 = arith.constant 164 : index
    %149 = vector.load %arg3[%c0_166, %c164_167] : memref<4x256xf32, #tpu.memory_space<vmem>>, vector<4x16xf32>
    %c16_168 = arith.constant 16 : index
    %c16_169 = arith.constant 16 : index
    %150 = vector.load %arg4[%c16_168, %c16_169] : memref<28x32xf32, #tpu.memory_space<vmem>>, vector<4x16xf32>
    tpu.vector_store %arg4[%c16_168, %c16_169], %149 {strides = array<i32>} : memref<28x32xf32, #tpu.memory_space<vmem>>, vector<4x16xf32>,
    %c0_170 = arith.constant 0 : index
    %c45_171 = arith.constant 45 : index
    %151 = vector.load %arg3[%c0_170, %c45_171] : memref<4x256xf32, #tpu.memory_space<vmem>>, vector<4x16xf32>
    %c20_172 = arith.constant 20 : index
    %c0_173 = arith.constant 0 : index
    %152 = vector.load %arg4[%c20_172, %c0_173] : memref<28x32xf32, #tpu.memory_space<vmem>>, vector<4x16xf32>
    tpu.vector_store %arg4[%c20_172, %c0_173], %151 {strides = array<i32>} : memref<28x32xf32, #tpu.memory_space<vmem>>, vector<4x16xf32>,
    %c0_174 = arith.constant 0 : index
    %c173_175 = arith.constant 173 : index
    %153 = vector.load %arg3[%c0_174, %c173_175] : memref<4x256xf32, #tpu.memory_space<vmem>>, vector<4x16xf32>
    %c20_176 = arith.constant 20 : index
    %c16_177 = arith.constant 16 : index
    %154 = vector.load %arg4[%c20_176, %c16_177] : memref<28x32xf32, #tpu.memory_space<vmem>>, vector<4x16xf32>
    tpu.vector_store %arg4[%c20_176, %c16_177], %153 {strides = array<i32>} : memref<28x32xf32, #tpu.memory_space<vmem>>, vector<4x16xf32>,
    %c0_178 = arith.constant 0 : index
    %c54_179 = arith.constant 54 : index
    %155 = vector.load %arg3[%c0_178, %c54_179] : memref<4x256xf32, #tpu.memory_space<vmem>>, vector<4x16xf32>
    %c24_180 = arith.constant 24 : index
    %c0_181 = arith.constant 0 : index
    %156 = vector.load %arg4[%c24_180, %c0_181] : memref<28x32xf32, #tpu.memory_space<vmem>>, vector<4x16xf32>
    tpu.vector_store %arg4[%c24_180, %c0_181], %155 {strides = array<i32>} : memref<28x32xf32, #tpu.memory_space<vmem>>, vector<4x16xf32>,
    %c0_182 = arith.constant 0 : index
    %c182_183 = arith.constant 182 : index
    %157 = vector.load %arg3[%c0_182, %c182_183] : memref<4x256xf32, #tpu.memory_space<vmem>>, vector<4x16xf32>
    %c24_184 = arith.constant 24 : index
    %c16_185 = arith.constant 16 : index
    %158 = vector.load %arg4[%c24_184, %c16_185] : memref<28x32xf32, #tpu.memory_space<vmem>>, vector<4x16xf32>
    tpu.vector_store %arg4[%c24_184, %c16_185], %157 {strides = array<i32>} : memref<28x32xf32, #tpu.memory_space<vmem>>, vector<4x16xf32>,
    %c0_186 = arith.constant 0 : index
    %c0_187 = arith.constant 0 : index
    %159 = vector.load %arg4[%c0_186, %c0_187] : memref<28x32xf32, #tpu.memory_space<vmem>>, vector<28x32xf32>
    %c16_188 = arith.constant 16 : index
    %c0_189 = arith.constant 0 : index
    %160 = vector.load %arg1[%c16_188, %c0_189] : memref<32x29xf32, #tpu.memory_space<vmem>>, vector<4x28xf32>
    %c16_190 = arith.constant 16 : index
    %c28_191 = arith.constant 28 : index
    %161 = vector.load %arg1[%c16_190, %c28_191] : memref<32x29xf32, #tpu.memory_space<vmem>>, vector<4x1xf32>
    %cst_192 = arith.constant dense<0.000000e+00> : vector<4x32xf32>
    %162 = tpu.matmul %160, %159, %cst_192 {dimension_numbers = #tpu.dot_dimension_numbers<[1], [0], [0], [1], [0, 0, 1, 1], [], []>} : vector<4x28xf32>, vector<28x32xf32>, vector<4x32xf32> -> vector<4x32xf32>
    %163 = vector.broadcast %161 : vector<4x1xf32> to vector<4x32xf32>
    %164 = arith.addf %162, %163 : vector<4x32xf32>
    %cst_193 = arith.constant 0.000000e+00 : f32
    %165 = vector.broadcast %cst_193 : f32 to vector<4x32xf32>
    %166 = arith.cmpf ogt, %164, %165 : vector<4x32xf32>
    %cst_194 = arith.constant 0.000000e+00 : f32
    %167 = vector.broadcast %cst_194 : f32 to vector<4x32xf32>
    %168 = arith.minimumf %164, %167 : vector<4x32xf32>
    %169 = math.exp %168 : vector<4x32xf32>
    %cst_195 = arith.constant 1.000000e+00 : f32
    %170 = vector.broadcast %cst_195 : f32 to vector<4x32xf32>
    %171 = arith.subf %169, %170 : vector<4x32xf32>
    %172 = arith.select %166, %164, %171 : vector<4x32xi1>, vector<4x32xf32>
    %c20_196 = arith.constant 20 : index
    %c0_197 = arith.constant 0 : index
    %173 = vector.load %arg1[%c20_196, %c0_197] : memref<32x29xf32, #tpu.memory_space<vmem>>, vector<4x4xf32>
    %c20_198 = arith.constant 20 : index
    %c28_199 = arith.constant 28 : index
    %174 = vector.load %arg1[%c20_198, %c28_199] : memref<32x29xf32, #tpu.memory_space<vmem>>, vector<4x1xf32>
    %cst_200 = arith.constant dense<0.000000e+00> : vector<4x32xf32>
    %175 = tpu.matmul %173, %172, %cst_200 {dimension_numbers = #tpu.dot_dimension_numbers<[1], [0], [0], [1], [0, 0, 1, 1], [], []>} : vector<4x4xf32>, vector<4x32xf32>, vector<4x32xf32> -> vector<4x32xf32>
    %176 = vector.broadcast %174 : vector<4x1xf32> to vector<4x32xf32>
    %177 = arith.addf %175, %176 : vector<4x32xf32>
    %cst_201 = arith.constant 0.000000e+00 : f32
    %178 = vector.broadcast %cst_201 : f32 to vector<4x32xf32>
    %179 = arith.cmpf ogt, %177, %178 : vector<4x32xf32>
    %cst_202 = arith.constant 0.000000e+00 : f32
    %180 = vector.broadcast %cst_202 : f32 to vector<4x32xf32>
    %181 = arith.minimumf %177, %180 : vector<4x32xf32>
    %182 = math.exp %181 : vector<4x32xf32>
    %cst_203 = arith.constant 1.000000e+00 : f32
    %183 = vector.broadcast %cst_203 : f32 to vector<4x32xf32>
    %184 = arith.subf %182, %183 : vector<4x32xf32>
    %185 = arith.select %179, %177, %184 : vector<4x32xi1>, vector<4x32xf32>
    %186 = arith.addf %185, %126 : vector<4x32xf32>
    %187 = vector.extract_strided_slice %186 {offsets = [0, 0], sizes = [4, 16], strides = [1, 1]} : vector<4x32xf32> to vector<4x16xf32>
    %c0_204 = arith.constant 0 : index
    %c54_205 = arith.constant 54 : index
    %188 = vector.load %arg3[%c0_204, %c54_205] : memref<4x256xf32, #tpu.memory_space<vmem>>, vector<4x16xf32>
    tpu.vector_store %arg3[%c0_204, %c54_205], %187 {strides = array<i32>} : memref<4x256xf32, #tpu.memory_space<vmem>>, vector<4x16xf32>,
    %189 = vector.extract_strided_slice %186 {offsets = [0, 16], sizes = [4, 16], strides = [1, 1]} : vector<4x32xf32> to vector<4x16xf32>
    %c0_206 = arith.constant 0 : index
    %c182_207 = arith.constant 182 : index
    %190 = vector.load %arg3[%c0_206, %c182_207] : memref<4x256xf32, #tpu.memory_space<vmem>>, vector<4x16xf32>
    tpu.vector_store %arg3[%c0_206, %c182_207], %189 {strides = array<i32>} : memref<4x256xf32, #tpu.memory_space<vmem>>, vector<4x16xf32>,
    %c0_208 = arith.constant 0 : index
    %c51_209 = arith.constant 51 : index
    %191 = vector.load %arg3[%c0_208, %c51_209] : memref<4x256xf32, #tpu.memory_space<vmem>>, vector<4x16xf32>
    %c0_210 = arith.constant 0 : index
    %c0_211 = arith.constant 0 : index
    %192 = vector.load %arg4[%c0_210, %c0_211] : memref<28x32xf32, #tpu.memory_space<vmem>>, vector<4x16xf32>
    tpu.vector_store %arg4[%c0_210, %c0_211], %191 {strides = array<i32>} : memref<28x32xf32, #tpu.memory_space<vmem>>, vector<4x16xf32>,
    %c0_212 = arith.constant 0 : index
    %c179_213 = arith.constant 179 : index
    %193 = vector.load %arg3[%c0_212, %c179_213] : memref<4x256xf32, #tpu.memory_space<vmem>>, vector<4x16xf32>
    %c0_214 = arith.constant 0 : index
    %c16_215 = arith.constant 16 : index
    %194 = vector.load %arg4[%c0_214, %c16_215] : memref<28x32xf32, #tpu.memory_space<vmem>>, vector<4x16xf32>
    tpu.vector_store %arg4[%c0_214, %c16_215], %193 {strides = array<i32>} : memref<28x32xf32, #tpu.memory_space<vmem>>, vector<4x16xf32>,
    %c0_216 = arith.constant 0 : index
    %c52_217 = arith.constant 52 : index
    %195 = vector.load %arg3[%c0_216, %c52_217] : memref<4x256xf32, #tpu.memory_space<vmem>>, vector<4x16xf32>
    %c4_218 = arith.constant 4 : index
    %c0_219 = arith.constant 0 : index
    %196 = vector.load %arg4[%c4_218, %c0_219] : memref<28x32xf32, #tpu.memory_space<vmem>>, vector<4x16xf32>
    tpu.vector_store %arg4[%c4_218, %c0_219], %195 {strides = array<i32>} : memref<28x32xf32, #tpu.memory_space<vmem>>, vector<4x16xf32>,
    %c0_220 = arith.constant 0 : index
    %c180_221 = arith.constant 180 : index
    %197 = vector.load %arg3[%c0_220, %c180_221] : memref<4x256xf32, #tpu.memory_space<vmem>>, vector<4x16xf32>
    %c4_222 = arith.constant 4 : index
    %c16_223 = arith.constant 16 : index
    %198 = vector.load %arg4[%c4_222, %c16_223] : memref<28x32xf32, #tpu.memory_space<vmem>>, vector<4x16xf32>
    tpu.vector_store %arg4[%c4_222, %c16_223], %197 {strides = array<i32>} : memref<28x32xf32, #tpu.memory_space<vmem>>, vector<4x16xf32>,
    %c0_224 = arith.constant 0 : index
    %c53_225 = arith.constant 53 : index
    %199 = vector.load %arg3[%c0_224, %c53_225] : memref<4x256xf32, #tpu.memory_space<vmem>>, vector<4x16xf32>
    %c8_226 = arith.constant 8 : index
    %c0_227 = arith.constant 0 : index
    %200 = vector.load %arg4[%c8_226, %c0_227] : memref<28x32xf32, #tpu.memory_space<vmem>>, vector<4x16xf32>
    tpu.vector_store %arg4[%c8_226, %c0_227], %199 {strides = array<i32>} : memref<28x32xf32, #tpu.memory_space<vmem>>, vector<4x16xf32>,
    %c0_228 = arith.constant 0 : index
    %c181_229 = arith.constant 181 : index
    %201 = vector.load %arg3[%c0_228, %c181_229] : memref<4x256xf32, #tpu.memory_space<vmem>>, vector<4x16xf32>
    %c8_230 = arith.constant 8 : index
    %c16_231 = arith.constant 16 : index
    %202 = vector.load %arg4[%c8_230, %c16_231] : memref<28x32xf32, #tpu.memory_space<vmem>>, vector<4x16xf32>
    tpu.vector_store %arg4[%c8_230, %c16_231], %201 {strides = array<i32>} : memref<28x32xf32, #tpu.memory_space<vmem>>, vector<4x16xf32>,
    %c0_232 = arith.constant 0 : index
    %c54_233 = arith.constant 54 : index
    %203 = vector.load %arg3[%c0_232, %c54_233] : memref<4x256xf32, #tpu.memory_space<vmem>>, vector<4x16xf32>
    %c12_234 = arith.constant 12 : index
    %c0_235 = arith.constant 0 : index
    %204 = vector.load %arg4[%c12_234, %c0_235] : memref<28x32xf32, #tpu.memory_space<vmem>>, vector<4x16xf32>
    tpu.vector_store %arg4[%c12_234, %c0_235], %203 {strides = array<i32>} : memref<28x32xf32, #tpu.memory_space<vmem>>, vector<4x16xf32>,
    %c0_236 = arith.constant 0 : index
    %c182_237 = arith.constant 182 : index
    %205 = vector.load %arg3[%c0_236, %c182_237] : memref<4x256xf32, #tpu.memory_space<vmem>>, vector<4x16xf32>
    %c12_238 = arith.constant 12 : index
    %c16_239 = arith.constant 16 : index
    %206 = vector.load %arg4[%c12_238, %c16_239] : memref<28x32xf32, #tpu.memory_space<vmem>>, vector<4x16xf32>
    tpu.vector_store %arg4[%c12_238, %c16_239], %205 {strides = array<i32>} : memref<28x32xf32, #tpu.memory_space<vmem>>, vector<4x16xf32>,
    %c0_240 = arith.constant 0 : index
    %c0_241 = arith.constant 0 : index
    %207 = vector.load %arg4[%c0_240, %c0_241] : memref<28x32xf32, #tpu.memory_space<vmem>>, vector<16x32xf32>
    %c24_242 = arith.constant 24 : index
    %c0_243 = arith.constant 0 : index
    %208 = vector.load %arg1[%c24_242, %c0_243] : memref<32x29xf32, #tpu.memory_space<vmem>>, vector<8x16xf32>
    %c24_244 = arith.constant 24 : index
    %c28_245 = arith.constant 28 : index
    %209 = vector.load %arg1[%c24_244, %c28_245] : memref<32x29xf32, #tpu.memory_space<vmem>>, vector<8x1xf32>
    %cst_246 = arith.constant dense<0.000000e+00> : vector<8x32xf32>
    %210 = tpu.matmul %208, %207, %cst_246 {dimension_numbers = #tpu.dot_dimension_numbers<[1], [0], [0], [1], [0, 0, 1, 1], [], []>} : vector<8x16xf32>, vector<16x32xf32>, vector<8x32xf32> -> vector<8x32xf32>
    %211 = vector.broadcast %209 : vector<8x1xf32> to vector<8x32xf32>
    %212 = arith.addf %210, %211 : vector<8x32xf32>
    %213 = tpu.iota {dimensions = array<i32: 0>} : vector<32x16xi32>
    %214 = tpu.iota {dimensions = array<i32: 1>} : vector<32x16xi32>
    %c2_i32 = arith.constant 2 : i32
    %215 = vector.broadcast %c2_i32 : i32 to vector<32x16xi32>
    %216 = arith.muli %214, %215 : vector<32x16xi32>
    %217 = arith.cmpi eq, %213, %216 : vector<32x16xi32>
    %218 = arith.extui %217 : vector<32x16xi1> to vector<32x16xi32>
    %219 = arith.sitofp %218 : vector<32x16xi32> to vector<32x16xf32>
    %cst_247 = arith.constant dense<0.000000e+00> : vector<8x16xf32>
    %220 = tpu.matmul %212, %219, %cst_247 {dimension_numbers = #tpu.dot_dimension_numbers<[1], [0], [0], [1], [0, 0, 1, 1], [], []>} : vector<8x32xf32>, vector<32x16xf32>, vector<8x16xf32> -> vector<8x16xf32>
    %cst_248 = arith.constant 0.000000e+00 : f32
    %221 = vector.broadcast %cst_248 : f32 to vector<8x16xf32>
    %222 = arith.cmpf ogt, %220, %221 : vector<8x16xf32>
    %cst_249 = arith.constant 0.000000e+00 : f32
    %223 = vector.broadcast %cst_249 : f32 to vector<8x16xf32>
    %224 = arith.minimumf %220, %223 : vector<8x16xf32>
    %225 = math.exp %224 : vector<8x16xf32>
    %cst_250 = arith.constant 1.000000e+00 : f32
    %226 = vector.broadcast %cst_250 : f32 to vector<8x16xf32>
    %227 = arith.subf %225, %226 : vector<8x16xf32>
    %228 = arith.select %222, %220, %227 : vector<8x16xi1>, vector<8x16xf32>
    %c0_251 = arith.constant 0 : index
    %c0_252 = arith.constant 0 : index
    %229 = vector.load %arg2[%c0_251, %c0_252] : memref<8x16xf32, #tpu.memory_space<vmem>>, vector<8x16xf32>
    tpu.vector_store %arg2[%c0_251, %c0_252], %228 {strides = array<i32>} : memref<8x16xf32, #tpu.memory_space<vmem>>, vector<8x16xf32>,
    return
  }
}

</mosaic_0001>

<llo_original>
// kernel: tpu_custom_call.1
$region0: #{tpu_custom_call.1}
  #allocation0 [shape = 'u32[]', space=smem, size = 0x4, offset = 0x4, fixed_abs, tag = 'smem constant byte address 0x4 - core index']
  #allocation1 [shape = 'u32[144,128]{1,0:T(1,128)}', space=vmem, size = 0x12000, scoped, tag = 'internal scratch']
  #allocation2 [shape = 'f32[4,256]{1,0:T(4,128)}', space=vmem, size = 0x1000, scoped, tag = 'scratch operand']
  #allocation3 [shape = 'f32[28,32]{1,0:T(8,128)}', space=vmem, size = 0x4000, scoped, tag = 'scratch operand']
  %s0 = inlined_call_operand.hbm [shape: f32[2,4,16], index: 0, kind: input, shape index: {}]
  %s1 = inlined_call_operand.hbm [shape: f32[32,29], index: 1, kind: input, shape index: {}]
  %s2 = inlined_call_operand.hbm [shape: f32[8,16], index: 2, kind: output, shape index: {}]
  %s3 = sld [smem:[#allocation0]]
  $region26: #{tpu_custom_call.1} parent=0
    _
  %s5 = ssub.s32 1, %s3
  %s6 = scalar_select 0, %s5, %s3
  $region1: #{tpu_custom_call.1} parent=0
    #allocation4 [shape = 'u8[4096]{0}', space=vmem, size = 0x1000, scoped, tag = 'input window, operand 0, single buffered']
    #allocation5 [shape = 's32[1]{0}', space=sflag, size = 0x4, scoped, tag = 'scoped memory for tpu_custom_call.1']
    #allocation6 [shape = 's32[1]{0}', space=sflag, size = 0x4, scoped, tag = 'scoped memory for tpu_custom_call.1']
    #allocation7 [shape = 'u8[16384]{0}', space=vmem, size = 0x4000, scoped, tag = 'input window, operand 1, single buffered']
    #allocation8 [shape = 's32[1]{0}', space=sflag, size = 0x4, scoped, tag = 'scoped memory for tpu_custom_call.1']
    #allocation9 [shape = 'u8[4096]{0}', space=vmem, size = 0x1000, scoped, tag = 'output window, operand 0, single buffered']
    %7 = vsyncpa [#allocation5], 0
    %8 = vsyncpa [#allocation8], 0
    %9 = vsyncpa [#allocation6], 0
    // Predicated region
    $region2: #{tpu_custom_call.1} parent=1 // pred_check
      _
    $region3: #{tpu_custom_call.1} parent=1 // pred_check_branch
      %11 = sbr.rel (0) target = $region5
    $region4: #{tpu_custom_call.1} parent=1 // pred_region
      %s13 = ssub.s32 128, 128
      %14 = vsyncadd [#allocation5], %s13
      %s15 = sshll.u32 [#allocation4], 4
      %s16 = int_to_ptr.vmem [resolvable:$true] %s15
      %21 = dma.hbm_to_vmem [thread:$0]  %s0, 128, %s16, [#allocation5], 64, 64, 4
    $region5: #{tpu_custom_call.1} parent=1 // pred_fallthru
      _
    // Predicated region
    $region6: #{tpu_custom_call.1} parent=1 // pred_check
      _
    $region7: #{tpu_custom_call.1} parent=1 // pred_check_branch
      %23 = sbr.rel (0) target = $region9
    $region8: #{tpu_custom_call.1} parent=1 // pred_region
      %s25 = ssub.s32 512, 512
      %26 = vsyncadd [#allocation8], %s25
      %s27 = sshll.u32 [#allocation7], 4
      %s28 = int_to_ptr.vmem [resolvable:$true] %s27
      %33 = dma.hbm_to_vmem [thread:$0]  %s1, 512, %s28, [#allocation8], 128, 128, 8
    $region9: #{tpu_custom_call.1} parent=1 // pred_fallthru
      _
    // Predicated region
    $region10: #{tpu_custom_call.1} parent=1 // pred_check
      _
    $region11: #{tpu_custom_call.1} parent=1 // pred_check_branch
      %35 = sbr.rel (0) target = $region13
    $region12: #{tpu_custom_call.1} parent=1 // pred_region
      %36 = dma.done [#allocation5], 128
    $region13: #{tpu_custom_call.1} parent=1 // pred_fallthru
      _
    // Predicated region
    $region14: #{tpu_custom_call.1} parent=1 // pred_check
      _
    $region15: #{tpu_custom_call.1} parent=1 // pred_check_branch
      %38 = sbr.rel (0) target = $region17
    $region16: #{tpu_custom_call.1} parent=1 // pred_region
      %39 = dma.done [#allocation8], 512
    $region17: #{tpu_custom_call.1} parent=1 // pred_fallthru
      _
    %40 = vst [vmem:[#allocation2] sm:$0xff] 0.0
    %v41 = vld [vmem:[#allocation4] sm:$0xf]
    %s42 = scalar_lea.vmem [#allocation4], 4
    %v43 = vld [vmem:[%s42] sm:$0xf]
    %45 = vrot.lane.b32.xlu0 %v43, 16
    %v46 = vpop.permute.xlu0 %45
    %vm48 = vcmask 130048
    %v49 = vsel %vm48, %v41, %v46
    %51 = vrot.lane.b32.xlu0 %v49, 54
    %v52 = vpop.permute.xlu0 %51
    %vm54 = vcmask 568752
    %55 = vst.msk [vmem:[#allocation2] sm:$0xf] %vm54, %v52
    %56 = vrot.lane.b32.xlu0 %v49, 38
    %v57 = vpop.permute.xlu0 %56
    %59 = vst.msk [vmem:[#allocation2 + $0x4] sm:$0xf] %vm54, %v57
    %v60 = vld [vmem:[#allocation2] sm:$0xf]
    %62 = vrot.lane.b32.xlu0 %v60, 80
    %v63 = vpop.permute.xlu0 %62
    %vm65 = vcmask 125952
    %66 = vst.msk [vmem:[#allocation3] sm:$0xf] %vm65, %v63
    %v67 = vld [vmem:[#allocation2 + $0x4] sm:$0xf]
    %69 = vrot.lane.b32.xlu0 %v67, 96
    %v70 = vpop.permute.xlu0 %69
    %vm72 = vcmask 257152
    %73 = vst.msk [vmem:[#allocation3] sm:$0xf] %vm72, %v70
    %v74 = vld [vmem:[#allocation2] sm:$0xf]
    %76 = vrot.lane.b32.xlu0 %v74, 79
    %v77 = vpop.permute.xlu0 %76
    %79 = vst.msk [vmem:[#allocation3 + $0x4] sm:$0xf] %vm65, %v77
    %v80 = vld [vmem:[#allocation2 + $0x4] sm:$0xf]
    %82 = vrot.lane.b32.xlu0 %v80, 95
    %v83 = vpop.permute.xlu0 %82
    %85 = vst.msk [vmem:[#allocation3 + $0x4] sm:$0xf] %vm72, %v83
    %v86 = vld [vmem:[#allocation2] sm:$0xf]
    %88 = vrot.lane.b32.xlu0 %v86, 78
    %v89 = vpop.permute.xlu0 %88
    %91 = vst.msk [vmem:[#allocation3 + $0x8] sm:$0xf] %vm65, %v89
    %v92 = vld [vmem:[#allocation2 + $0x4] sm:$0xf]
    %94 = vrot.lane.b32.xlu0 %v92, 94
    %v95 = vpop.permute.xlu0 %94
    %97 = vst.msk [vmem:[#allocation3 + $0x8] sm:$0xf] %vm72, %v95
    %v98 = vld [vmem:[#allocation2] sm:$0xf]
    %100 = vrot.lane.b32.xlu0 %v98, 77
    %v101 = vpop.permute.xlu0 %100
    %103 = vst.msk [vmem:[#allocation3 + $0xc] sm:$0xf] %vm65, %v101
    %v104 = vld [vmem:[#allocation2 + $0x4] sm:$0xf]
    %106 = vrot.lane.b32.xlu0 %v104, 93
    %v107 = vpop.permute.xlu0 %106
    %109 = vst.msk [vmem:[#allocation3 + $0xc] sm:$0xf] %vm72, %v107
    %v110 = vld [vmem:[#allocation2] sm:$0xf]
    %112 = vrot.lane.b32.xlu0 %v110, 76
    %v113 = vpop.permute.xlu0 %112
    %115 = vst.msk [vmem:[#allocation3 + $0x10] sm:$0xf] %vm65, %v113
    %v116 = vld [vmem:[#allocation2 + $0x4] sm:$0xf]
    %118 = vrot.lane.b32.xlu0 %v116, 92
    %v119 = vpop.permute.xlu0 %118
    %121 = vst.msk [vmem:[#allocation3 + $0x10] sm:$0xf] %vm72, %v119
    %v122 = vld [vmem:[#allocation2] sm:$0xf]
    %124 = vrot.lane.b32.xlu0 %v122, 75
    %v125 = vpop.permute.xlu0 %124
    %127 = vst.msk [vmem:[#allocation3 + $0x14] sm:$0xf] %vm65, %v125
    %v128 = vld [vmem:[#allocation2 + $0x4] sm:$0xf]
    %130 = vrot.lane.b32.xlu0 %v128, 91
    %v131 = vpop.permute.xlu0 %130
    %133 = vst.msk [vmem:[#allocation3 + $0x14] sm:$0xf] %vm72, %v131
    %v134 = vld [vmem:[#allocation2] sm:$0xf]
    %136 = vrot.lane.b32.xlu0 %v134, 74
    %v137 = vpop.permute.xlu0 %136
    %139 = vst.msk [vmem:[#allocation3 + $0x18] sm:$0xf] %vm65, %v137
    %v140 = vld [vmem:[#allocation2 + $0x4] sm:$0xf]
    %142 = vrot.lane.b32.xlu0 %v140, 90
    %v143 = vpop.permute.xlu0 %142
    %145 = vst.msk [vmem:[#allocation3 + $0x18] sm:$0xf] %vm72, %v143
    %v146 = vld [vmem:[#allocation3] sm:$0xff]
    %v147 = vld [vmem:[#allocation3 + $0x8] sm:$0xff]
    %v148 = vld [vmem:[#allocation3 + $0x10] sm:$0xff]
    %v149 = vld [vmem:[#allocation3 + $0x18] sm:$0xf]
    %v150 = vld [vmem:[#allocation7] sm:$0xf]
    %152 = vset.pattern.permute.xlu0 28
    %153 = vperm.xlu0 %152, %v150
    %v154 = vpop.permute.xlu0 %153
    %vm156 = vcmask 228352
    %v157 = vsel %vm156, %v150, 0
    %vm159 = vcmask 1043456
    %v161 = vsel %vm159, %v149, 0
    %163 = vmatprep.subr.mxu0 0.0
    %164 = vmatpush1.msra.mxu0 %v146
    %165 = vmatprep.subr.mxu0 0.0
    %166 = vmatpush1.msra.mxu0 %v147
    %167 = vmatprep.subr.mxu0 0.0
    %168 = vmatpush1.msra.mxu0 %v148
    %169 = vmatprep.subr.mxu0 0.0
    %170 = vmatpush1.msra.mxu0 %v161
    %171 = vmatprep.subr.mxu0 0.0
    %172 = vmatpush1.msra.mxu0 0.0
    %173 = vmatprep.subr.mxu0 0.0
    %174 = vmatpush1.msra.mxu0 0.0
    %175 = vmatprep.subr.mxu0 0.0
    %176 = vmatpush1.msra.mxu0 0.0
    %177 = vmatprep.subr.mxu0 0.0
    %178 = vmatpush1.msra.mxu0 0.0
    %179 = vmatprep.subr.mxu0 0.0
    %180 = vmatpush1.msra.mxu0 0.0
    %181 = vmatprep.subr.mxu0 0.0
    %182 = vmatpush1.msra.mxu0 0.0
    %183 = vmatprep.subr.mxu0 0.0
    %184 = vmatpush1.msra.mxu0 0.0
    %185 = vmatprep.subr.mxu0 0.0
    %186 = vmatpush1.msra.mxu0 0.0
    %187 = vmatprep.subr.mxu0 0.0
    %188 = vmatpush1.msra.mxu0 0.0
    %189 = vmatprep.subr.mxu0 0.0
    %190 = vmatpush1.msra.mxu0 0.0
    %191 = vmatprep.subr.mxu0 0.0
    %192 = vmatpush1.msra.mxu0 0.0
    %193 = vmatprep.subr.mxu0 0.0
    %194 = vmatpush1.msra.mxu0 0.0
    %195 = vmatprep.subr.mxu0 0.0
    %196 = vmatpush1.msra.mxu0 0.0
    %197 = vmatprep.subr.mxu0 0.0
    %198 = vmatpush1.msra.mxu0 0.0
    %199 = vmatprep.subr.mxu0 0.0
    %200 = vmatpush1.msra.mxu0 0.0
    %201 = vmatprep.subr.mxu0 0.0
    %202 = vmatpush1.msra.mxu0 0.0
    %203 = vmatprep.subr.mxu0 0.0
    %204 = vmatpush1.msra.mxu0 0.0
    %205 = vmatprep.subr.mxu0 0.0
    %206 = vmatpush1.msra.mxu0 0.0
    %207 = vmatprep.subr.mxu0 0.0
    %208 = vmatpush1.msra.mxu0 0.0
    %209 = vmatprep.subr.mxu0 0.0
    %210 = vmatpush1.msra.mxu0 0.0
    %211 = vmatprep.subr.mxu0 0.0
    %212 = vmatpush1.msra.mxu0 0.0
    %213 = vmatprep.subr.mxu0 0.0
    %214 = vmatpush1.msra.mxu0 0.0
    %215 = vmatprep.subr.mxu0 0.0
    %216 = vmatpush1.msra.mxu0 0.0
    %217 = vmatprep.subr.mxu0 0.0
    %218 = vmatpush1.msra.mxu0 0.0
    %219 = vmatprep.subr.mxu0 0.0
    %220 = vmatpush1.msra.mxu0 0.0
    %221 = vmatprep.subr.mxu0 0.0
    %222 = vmatpush1.msra.mxu0 0.0
    %223 = vmatprep.subr.mxu0 0.0
    %224 = vmatpush1.msra.mxu0 0.0
    %225 = vmatprep.subr.mxu0 0.0
    %226 = vmatpush1.msra.mxu0 0.0
    %227 = vmatprep.mubr.f32.mxu0 0.0
    %228 = vmatmul.mubr.f32.gmra.mrb[0].mxu0 %v157
    %v229 = vpop.f32.mrb[0].mxu0
    %v230 = vadd.f32 %v154, %v229
    %v231 = vpop.f32.mrb[0].mxu0
    %232 = vdwg.mxu0
    %vm233 = vcmp.gt.f32.partialorder %v230, 0.0
    %v234 = vmin.f32 %v230, 0.0
    %v235 = vmul.f32 %v234, 1.442695
    %v236 = vpow.pop %v235
    %v237 = vsub.f32 %v236, 1.0
    %v238 = vsel %vm233, %v230, %v237
    %v239 = vld [vmem:[#allocation7 + $0x4] sm:$0xf]
    %241 = vset.pattern.permute.xlu0 28
    %242 = vperm.xlu0 %241, %v239
    %v243 = vpop.permute.xlu0 %242
    %vm245 = vcmask 31744
    %v246 = vsel %vm245, %v239, 0
    %v249 = vsel %vm159, %v238, 0
    %251 = vmatprep.subr.mxu0 0.0
    %252 = vmatpush1.msra.mxu0 %v249
    %253 = vmatprep.subr.mxu0 0.0
    %254 = vmatpush1.msra.mxu0 0.0
    %255 = vmatprep.subr.mxu0 0.0
    %256 = vmatpush1.msra.mxu0 0.0
    %257 = vmatprep.subr.mxu0 0.0
    %258 = vmatpush1.msra.mxu0 0.0
    %259 = vmatprep.subr.mxu0 0.0
    %260 = vmatpush1.msra.mxu0 0.0
    %261 = vmatprep.subr.mxu0 0.0
    %262 = vmatpush1.msra.mxu0 0.0
    %263 = vmatprep.subr.mxu0 0.0
    %264 = vmatpush1.msra.mxu0 0.0
    %265 = vmatprep.subr.mxu0 0.0
    %266 = vmatpush1.msra.mxu0 0.0
    %267 = vmatprep.subr.mxu0 0.0
    %268 = vmatpush1.msra.mxu0 0.0
    %269 = vmatprep.subr.mxu0 0.0
    %270 = vmatpush1.msra.mxu0 0.0
    %271 = vmatprep.subr.mxu0 0.0
    %272 = vmatpush1.msra.mxu0 0.0
    %273 = vmatprep.subr.mxu0 0.0
    %274 = vmatpush1.msra.mxu0 0.0
    %275 = vmatprep.subr.mxu0 0.0
    %276 = vmatpush1.msra.mxu0 0.0
    %277 = vmatprep.subr.mxu0 0.0
    %278 = vmatpush1.msra.mxu0 0.0
    %279 = vmatprep.subr.mxu0 0.0
    %280 = vmatpush1.msra.mxu0 0.0
    %281 = vmatprep.subr.mxu0 0.0
    %282 = vmatpush1.msra.mxu0 0.0
    %283 = vmatprep.subr.mxu0 0.0
    %284 = vmatpush1.msra.mxu0 0.0
    %285 = vmatprep.subr.mxu0 0.0
    %286 = vmatpush1.msra.mxu0 0.0
    %287 = vmatprep.subr.mxu0 0.0
    %288 = vmatpush1.msra.mxu0 0.0
    %289 = vmatprep.subr.mxu0 0.0
    %290 = vmatpush1.msra.mxu0 0.0
    %291 = vmatprep.subr.mxu0 0.0
    %292 = vmatpush1.msra.mxu0 0.0
    %293 = vmatprep.subr.mxu0 0.0
    %294 = vmatpush1.msra.mxu0 0.0
    %295 = vmatprep.subr.mxu0 0.0
    %296 = vmatpush1.msra.mxu0 0.0
    %297 = vmatprep.subr.mxu0 0.0
    %298 = vmatpush1.msra.mxu0 0.0
    %299 = vmatprep.subr.mxu0 0.0
    %300 = vmatpush1.msra.mxu0 0.0
    %301 = vmatprep.subr.mxu0 0.0
    %302 = vmatpush1.msra.mxu0 0.0
    %303 = vmatprep.subr.mxu0 0.0
    %304 = vmatpush1.msra.mxu0 0.0
    %305 = vmatprep.subr.mxu0 0.0
    %306 = vmatpush1.msra.mxu0 0.0
    %307 = vmatprep.subr.mxu0 0.0
    %308 = vmatpush1.msra.mxu0 0.0
    %309 = vmatprep.subr.mxu0 0.0
    %310 = vmatpush1.msra.mxu0 0.0
    %311 = vmatprep.subr.mxu0 0.0
    %312 = vmatpush1.msra.mxu0 0.0
    %313 = vmatprep.subr.mxu0 0.0
    %314 = vmatpush1.msra.mxu0 0.0
    %315 = vmatprep.mubr.f32.mxu0 0.0
    %316 = vmatmul.mubr.f32.gmra.mrb[0].mxu0 %v246
    %v317 = vpop.f32.mrb[0].mxu0
    %v318 = vadd.f32 %v243, %v317
    %v319 = vpop.f32.mrb[0].mxu0
    %320 = vdwg.mxu0
    %vm321 = vcmp.gt.f32.partialorder %v318, 0.0
    %v322 = vmin.f32 %v318, 0.0
    %v323 = vmul.f32 %v322, 1.442695
    %v324 = vpow.pop %v323
    %v325 = vsub.f32 %v324, 1.0
    %v326 = vsel %vm321, %v318, %v325
    %v327 = vadd.f32 %v326, %v49
    %329 = vrot.lane.b32.xlu0 %v327, 54
    %v330 = vpop.permute.xlu0 %329
    %332 = vst.msk [vmem:[#allocation2] sm:$0xf] %vm54, %v330
    %333 = vrot.lane.b32.xlu0 %v327, 38
    %v334 = vpop.permute.xlu0 %333
    %336 = vst.msk [vmem:[#allocation2 + $0x4] sm:$0xf] %vm54, %v334
    %v337 = vld [vmem:[#allocation2] sm:$0xf]
    %339 = vrot.lane.b32.xlu0 %v337, 92
    %v340 = vpop.permute.xlu0 %339
    %342 = vst.msk [vmem:[#allocation3] sm:$0xf] %vm65, %v340
    %v343 = vld [vmem:[#allocation2 + $0x4] sm:$0xf]
    %345 = vrot.lane.b32.xlu0 %v343, 108
    %v346 = vpop.permute.xlu0 %345
    %348 = vst.msk [vmem:[#allocation3] sm:$0xf] %vm72, %v346
    %v349 = vld [vmem:[#allocation2] sm:$0xf]
    %351 = vrot.lane.b32.xlu0 %v349, 89
    %v352 = vpop.permute.xlu0 %351
    %354 = vst.msk [vmem:[#allocation3 + $0x4] sm:$0xf] %vm65, %v352
    %v355 = vld [vmem:[#allocation2 + $0x4] sm:$0xf]
    %357 = vrot.lane.b32.xlu0 %v355, 105
    %v358 = vpop.permute.xlu0 %357
    %360 = vst.msk [vmem:[#allocation3 + $0x4] sm:$0xf] %vm72, %v358
    %v361 = vld [vmem:[#allocation2] sm:$0xf]
    %363 = vrot.lane.b32.xlu0 %v361, 86
    %v364 = vpop.permute.xlu0 %363
    %366 = vst.msk [vmem:[#allocation3 + $0x8] sm:$0xf] %vm65, %v364
    %v367 = vld [vmem:[#allocation2 + $0x4] sm:$0xf]
    %369 = vrot.lane.b32.xlu0 %v367, 102
    %v370 = vpop.permute.xlu0 %369
    %372 = vst.msk [vmem:[#allocation3 + $0x8] sm:$0xf] %vm72, %v370
    %v373 = vld [vmem:[#allocation2] sm:$0xf]
    %375 = vrot.lane.b32.xlu0 %v373, 83
    %v376 = vpop.permute.xlu0 %375
    %378 = vst.msk [vmem:[#allocation3 + $0xc] sm:$0xf] %vm65, %v376
    %v379 = vld [vmem:[#allocation2 + $0x4] sm:$0xf]
    %381 = vrot.lane.b32.xlu0 %v379, 99
    %v382 = vpop.permute.xlu0 %381
    %384 = vst.msk [vmem:[#allocation3 + $0xc] sm:$0xf] %vm72, %v382
    %v385 = vld [vmem:[#allocation2] sm:$0xf]
    %387 = vrot.lane.b32.xlu0 %v385, 80
    %v388 = vpop.permute.xlu0 %387
    %390 = vst.msk [vmem:[#allocation3 + $0x10] sm:$0xf] %vm65, %v388
    %v391 = vld [vmem:[#allocation2 + $0x4] sm:$0xf]
    %393 = vrot.lane.b32.xlu0 %v391, 96
    %v394 = vpop.permute.xlu0 %393
    %396 = vst.msk [vmem:[#allocation3 + $0x10] sm:$0xf] %vm72, %v394
    %v397 = vld [vmem:[#allocation2] sm:$0xf]
    %399 = vrot.lane.b32.xlu0 %v397, 77
    %v400 = vpop.permute.xlu0 %399
    %402 = vst.msk [vmem:[#allocation3 + $0x14] sm:$0xf] %vm65, %v400
    %v403 = vld [vmem:[#allocation2 + $0x4] sm:$0xf]
    %405 = vrot.lane.b32.xlu0 %v403, 93
    %v406 = vpop.permute.xlu0 %405
    %408 = vst.msk [vmem:[#allocation3 + $0x14] sm:$0xf] %vm72, %v406
    %v409 = vld [vmem:[#allocation2] sm:$0xf]
    %411 = vrot.lane.b32.xlu0 %v409, 74
    %v412 = vpop.permute.xlu0 %411
    %414 = vst.msk [vmem:[#allocation3 + $0x18] sm:$0xf] %vm65, %v412
    %v415 = vld [vmem:[#allocation2 + $0x4] sm:$0xf]
    %417 = vrot.lane.b32.xlu0 %v415, 90
    %v418 = vpop.permute.xlu0 %417
    %420 = vst.msk [vmem:[#allocation3 + $0x18] sm:$0xf] %vm72, %v418
    %v421 = vld [vmem:[#allocation3] sm:$0xff]
    %v422 = vld [vmem:[#allocation3 + $0x8] sm:$0xff]
    %v423 = vld [vmem:[#allocation3 + $0x10] sm:$0xff]
    %v424 = vld [vmem:[#allocation3 + $0x18] sm:$0xf]
    %v425 = vld [vmem:[#allocation7 + $0x8] sm:$0xf]
    %427 = vset.pattern.permute.xlu0 28
    %428 = vperm.xlu0 %427, %v425
    %v429 = vpop.permute.xlu0 %428
    %v431 = vsel %vm156, %v425, 0
    %v434 = vsel %vm159, %v424, 0
    %436 = vmatprep.subr.mxu0 0.0
    %437 = vmatpush1.msra.mxu0 %v421
    %438 = vmatprep.subr.mxu0 0.0
    %439 = vmatpush1.msra.mxu0 %v422
    %440 = vmatprep.subr.mxu0 0.0
    %441 = vmatpush1.msra.mxu0 %v423
    %442 = vmatprep.subr.mxu0 0.0
    %443 = vmatpush1.msra.mxu0 %v434
    %444 = vmatprep.subr.mxu0 0.0
    %445 = vmatpush1.msra.mxu0 0.0
    %446 = vmatprep.subr.mxu0 0.0
    %447 = vmatpush1.msra.mxu0 0.0
    %448 = vmatprep.subr.mxu0 0.0
    %449 = vmatpush1.msra.mxu0 0.0
    %450 = vmatprep.subr.mxu0 0.0
    %451 = vmatpush1.msra.mxu0 0.0
    %452 = vmatprep.subr.mxu0 0.0
    %453 = vmatpush1.msra.mxu0 0.0
    %454 = vmatprep.subr.mxu0 0.0
    %455 = vmatpush1.msra.mxu0 0.0
    %456 = vmatprep.subr.mxu0 0.0
    %457 = vmatpush1.msra.mxu0 0.0
    %458 = vmatprep.subr.mxu0 0.0
    %459 = vmatpush1.msra.mxu0 0.0
    %460 = vmatprep.subr.mxu0 0.0
    %461 = vmatpush1.msra.mxu0 0.0
    %462 = vmatprep.subr.mxu0 0.0
    %463 = vmatpush1.msra.mxu0 0.0
    %464 = vmatprep.subr.mxu0 0.0
    %465 = vmatpush1.msra.mxu0 0.0
    %466 = vmatprep.subr.mxu0 0.0
    %467 = vmatpush1.msra.mxu0 0.0
    %468 = vmatprep.subr.mxu0 0.0
    %469 = vmatpush1.msra.mxu0 0.0
    %470 = vmatprep.subr.mxu0 0.0
    %471 = vmatpush1.msra.mxu0 0.0
    %472 = vmatprep.subr.mxu0 0.0
    %473 = vmatpush1.msra.mxu0 0.0
    %474 = vmatprep.subr.mxu0 0.0
    %475 = vmatpush1.msra.mxu0 0.0
    %476 = vmatprep.subr.mxu0 0.0
    %477 = vmatpush1.msra.mxu0 0.0
    %478 = vmatprep.subr.mxu0 0.0
    %479 = vmatpush1.msra.mxu0 0.0
    %480 = vmatprep.subr.mxu0 0.0
    %481 = vmatpush1.msra.mxu0 0.0
    %482 = vmatprep.subr.mxu0 0.0
    %483 = vmatpush1.msra.mxu0 0.0
    %484 = vmatprep.subr.mxu0 0.0
    %485 = vmatpush1.msra.mxu0 0.0
    %486 = vmatprep.subr.mxu0 0.0
    %487 = vmatpush1.msra.mxu0 0.0
    %488 = vmatprep.subr.mxu0 0.0
    %489 = vmatpush1.msra.mxu0 0.0
    %490 = vmatprep.subr.mxu0 0.0
    %491 = vmatpush1.msra.mxu0 0.0
    %492 = vmatprep.subr.mxu0 0.0
    %493 = vmatpush1.msra.mxu0 0.0
    %494 = vmatprep.subr.mxu0 0.0
    %495 = vmatpush1.msra.mxu0 0.0
    %496 = vmatprep.subr.mxu0 0.0
    %497 = vmatpush1.msra.mxu0 0.0
    %498 = vmatprep.subr.mxu0 0.0
    %499 = vmatpush1.msra.mxu0 0.0
    %500 = vmatprep.mubr.f32.mxu0 0.0
    %501 = vmatmul.mubr.f32.gmra.mrb[0].mxu0 %v431
    %v502 = vpop.f32.mrb[0].mxu0
    %v503 = vadd.f32 %v429, %v502
    %v504 = vpop.f32.mrb[0].mxu0
    %505 = vdwg.mxu0
    %vm506 = vcmp.gt.f32.partialorder %v503, 0.0
    %v507 = vmin.f32 %v503, 0.0
    %v508 = vmul.f32 %v507, 1.442695
    %v509 = vpow.pop %v508
    %v510 = vsub.f32 %v509, 1.0
    %v511 = vsel %vm506, %v503, %v510
    %v512 = vld [vmem:[#allocation7 + $0xc] sm:$0xf]
    %514 = vset.pattern.permute.xlu0 28
    %515 = vperm.xlu0 %514, %v512
    %v516 = vpop.permute.xlu0 %515
    %v518 = vsel %vm245, %v512, 0
    %v521 = vsel %vm159, %v511, 0
    %523 = vmatprep.subr.mxu0 0.0
    %524 = vmatpush1.msra.mxu0 %v521
    %525 = vmatprep.subr.mxu0 0.0
    %526 = vmatpush1.msra.mxu0 0.0
    %527 = vmatprep.subr.mxu0 0.0
    %528 = vmatpush1.msra.mxu0 0.0
    %529 = vmatprep.subr.mxu0 0.0
    %530 = vmatpush1.msra.mxu0 0.0
    %531 = vmatprep.subr.mxu0 0.0
    %532 = vmatpush1.msra.mxu0 0.0
    %533 = vmatprep.subr.mxu0 0.0
    %534 = vmatpush1.msra.mxu0 0.0
    %535 = vmatprep.subr.mxu0 0.0
    %536 = vmatpush1.msra.mxu0 0.0
    %537 = vmatprep.subr.mxu0 0.0
    %538 = vmatpush1.msra.mxu0 0.0
    %539 = vmatprep.subr.mxu0 0.0
    %540 = vmatpush1.msra.mxu0 0.0
    %541 = vmatprep.subr.mxu0 0.0
    %542 = vmatpush1.msra.mxu0 0.0
    %543 = vmatprep.subr.mxu0 0.0
    %544 = vmatpush1.msra.mxu0 0.0
    %545 = vmatprep.subr.mxu0 0.0
    %546 = vmatpush1.msra.mxu0 0.0
    %547 = vmatprep.subr.mxu0 0.0
    %548 = vmatpush1.msra.mxu0 0.0
    %549 = vmatprep.subr.mxu0 0.0
    %550 = vmatpush1.msra.mxu0 0.0
    %551 = vmatprep.subr.mxu0 0.0
    %552 = vmatpush1.msra.mxu0 0.0
    %553 = vmatprep.subr.mxu0 0.0
    %554 = vmatpush1.msra.mxu0 0.0
    %555 = vmatprep.subr.mxu0 0.0
    %556 = vmatpush1.msra.mxu0 0.0
    %557 = vmatprep.subr.mxu0 0.0
    %558 = vmatpush1.msra.mxu0 0.0
    %559 = vmatprep.subr.mxu0 0.0
    %560 = vmatpush1.msra.mxu0 0.0
    %561 = vmatprep.subr.mxu0 0.0
    %562 = vmatpush1.msra.mxu0 0.0
    %563 = vmatprep.subr.mxu0 0.0
    %564 = vmatpush1.msra.mxu0 0.0
    %565 = vmatprep.subr.mxu0 0.0
    %566 = vmatpush1.msra.mxu0 0.0
    %567 = vmatprep.subr.mxu0 0.0
    %568 = vmatpush1.msra.mxu0 0.0
    %569 = vmatprep.subr.mxu0 0.0
    %570 = vmatpush1.msra.mxu0 0.0
    %571 = vmatprep.subr.mxu0 0.0
    %572 = vmatpush1.msra.mxu0 0.0
    %573 = vmatprep.subr.mxu0 0.0
    %574 = vmatpush1.msra.mxu0 0.0
    %575 = vmatprep.subr.mxu0 0.0
    %576 = vmatpush1.msra.mxu0 0.0
    %577 = vmatprep.subr.mxu0 0.0
    %578 = vmatpush1.msra.mxu0 0.0
    %579 = vmatprep.subr.mxu0 0.0
    %580 = vmatpush1.msra.mxu0 0.0
    %581 = vmatprep.subr.mxu0 0.0
    %582 = vmatpush1.msra.mxu0 0.0
    %583 = vmatprep.subr.mxu0 0.0
    %584 = vmatpush1.msra.mxu0 0.0
    %585 = vmatprep.subr.mxu0 0.0
    %586 = vmatpush1.msra.mxu0 0.0
    %587 = vmatprep.mubr.f32.mxu0 0.0
    %588 = vmatmul.mubr.f32.gmra.mrb[0].mxu0 %v518
    %v589 = vpop.f32.mrb[0].mxu0
    %v590 = vadd.f32 %v516, %v589
    %v591 = vpop.f32.mrb[0].mxu0
    %592 = vdwg.mxu0
    %vm593 = vcmp.gt.f32.partialorder %v590, 0.0
    %v594 = vmin.f32 %v590, 0.0
    %v595 = vmul.f32 %v594, 1.442695
    %v596 = vpow.pop %v595
    %v597 = vsub.f32 %v596, 1.0
    %v598 = vsel %vm593, %v590, %v597
    %v599 = vadd.f32 %v598, %v327
    %601 = vrot.lane.b32.xlu0 %v599, 54
    %v602 = vpop.permute.xlu0 %601
    %604 = vst.msk [vmem:[#allocation2] sm:$0xf] %vm54, %v602
    %605 = vrot.lane.b32.xlu0 %v599, 38
    %v606 = vpop.permute.xlu0 %605
    %608 = vst.msk [vmem:[#allocation2 + $0x4] sm:$0xf] %vm54, %v606
    %v609 = vld [vmem:[#allocation2] sm:$0xf]
    %610 = vst.msk [vmem:[#allocation3] sm:$0xf] %vm65, %v609
    %v611 = vld [vmem:[#allocation2 + $0x4] sm:$0xf]
    %613 = vrot.lane.b32.xlu0 %v611, 16
    %v614 = vpop.permute.xlu0 %613
    %616 = vst.msk [vmem:[#allocation3] sm:$0xf] %vm72, %v614
    %v617 = vld [vmem:[#allocation2] sm:$0xf]
    %619 = vrot.lane.b32.xlu0 %v617, 119
    %v620 = vpop.permute.xlu0 %619
    %622 = vst.msk [vmem:[#allocation3 + $0x4] sm:$0xf] %vm65, %v620
    %v623 = vld [vmem:[#allocation2 + $0x4] sm:$0xf]
    %625 = vrot.lane.b32.xlu0 %v623, 7
    %v626 = vpop.permute.xlu0 %625
    %628 = vst.msk [vmem:[#allocation3 + $0x4] sm:$0xf] %vm72, %v626
    %v629 = vld [vmem:[#allocation2] sm:$0xf]
    %631 = vrot.lane.b32.xlu0 %v629, 110
    %v632 = vpop.permute.xlu0 %631
    %634 = vst.msk [vmem:[#allocation3 + $0x8] sm:$0xf] %vm65, %v632
    %v635 = vld [vmem:[#allocation2 + $0x4] sm:$0xf]
    %637 = vrot.lane.b32.xlu0 %v635, 126
    %v638 = vpop.permute.xlu0 %637
    %640 = vst.msk [vmem:[#allocation3 + $0x8] sm:$0xf] %vm72, %v638
    %v641 = vld [vmem:[#allocation2] sm:$0xf]
    %643 = vrot.lane.b32.xlu0 %v641, 101
    %v644 = vpop.permute.xlu0 %643
    %646 = vst.msk [vmem:[#allocation3 + $0xc] sm:$0xf] %vm65, %v644
    %v647 = vld [vmem:[#allocation2 + $0x4] sm:$0xf]
    %649 = vrot.lane.b32.xlu0 %v647, 117
    %v650 = vpop.permute.xlu0 %649
    %652 = vst.msk [vmem:[#allocation3 + $0xc] sm:$0xf] %vm72, %v650
    %v653 = vld [vmem:[#allocation2] sm:$0xf]
    %655 = vrot.lane.b32.xlu0 %v653, 92
    %v656 = vpop.permute.xlu0 %655
    %658 = vst.msk [vmem:[#allocation3 + $0x10] sm:$0xf] %vm65, %v656
    %v659 = vld [vmem:[#allocation2 + $0x4] sm:$0xf]
    %661 = vrot.lane.b32.xlu0 %v659, 108
    %v662 = vpop.permute.xlu0 %661
    %664 = vst.msk [vmem:[#allocation3 + $0x10] sm:$0xf] %vm72, %v662
    %v665 = vld [vmem:[#allocation2] sm:$0xf]
    %667 = vrot.lane.b32.xlu0 %v665, 83
    %v668 = vpop.permute.xlu0 %667
    %670 = vst.msk [vmem:[#allocation3 + $0x14] sm:$0xf] %vm65, %v668
    %v671 = vld [vmem:[#allocation2 + $0x4] sm:$0xf]
    %673 = vrot.lane.b32.xlu0 %v671, 99
    %v674 = vpop.permute.xlu0 %673
    %676 = vst.msk [vmem:[#allocation3 + $0x14] sm:$0xf] %vm72, %v674
    %v677 = vld [vmem:[#allocation2] sm:$0xf]
    %679 = vrot.lane.b32.xlu0 %v677, 74
    %v680 = vpop.permute.xlu0 %679
    %682 = vst.msk [vmem:[#allocation3 + $0x18] sm:$0xf] %vm65, %v680
    %v683 = vld [vmem:[#allocation2 + $0x4] sm:$0xf]
    %685 = vrot.lane.b32.xlu0 %v683, 90
    %v686 = vpop.permute.xlu0 %685
    %688 = vst.msk [vmem:[#allocation3 + $0x18] sm:$0xf] %vm72, %v686
    %v689 = vld [vmem:[#allocation3] sm:$0xff]
    %v690 = vld [vmem:[#allocation3 + $0x8] sm:$0xff]
    %v691 = vld [vmem:[#allocation3 + $0x10] sm:$0xff]
    %v692 = vld [vmem:[#allocation3 + $0x18] sm:$0xf]
    %v693 = vld [vmem:[#allocation7 + $0x10] sm:$0xf]
    %695 = vset.pattern.permute.xlu0 28
    %696 = vperm.xlu0 %695, %v693
    %v697 = vpop.permute.xlu0 %696
    %v699 = vsel %vm156, %v693, 0
    %v702 = vsel %vm159, %v692, 0
    %704 = vmatprep.subr.mxu0 0.0
    %705 = vmatpush1.msra.mxu0 %v689
    %706 = vmatprep.subr.mxu0 0.0
    %707 = vmatpush1.msra.mxu0 %v690
    %708 = vmatprep.subr.mxu0 0.0
    %709 = vmatpush1.msra.mxu0 %v691
    %710 = vmatprep.subr.mxu0 0.0
    %711 = vmatpush1.msra.mxu0 %v702
    %712 = vmatprep.subr.mxu0 0.0
    %713 = vmatpush1.msra.mxu0 0.0
    %714 = vmatprep.subr.mxu0 0.0
    %715 = vmatpush1.msra.mxu0 0.0
    %716 = vmatprep.subr.mxu0 0.0
    %717 = vmatpush1.msra.mxu0 0.0
    %718 = vmatprep.subr.mxu0 0.0
    %719 = vmatpush1.msra.mxu0 0.0
    %720 = vmatprep.subr.mxu0 0.0
    %721 = vmatpush1.msra.mxu0 0.0
    %722 = vmatprep.subr.mxu0 0.0
    %723 = vmatpush1.msra.mxu0 0.0
    %724 = vmatprep.subr.mxu0 0.0
    %725 = vmatpush1.msra.mxu0 0.0
    %726 = vmatprep.subr.mxu0 0.0
    %727 = vmatpush1.msra.mxu0 0.0
    %728 = vmatprep.subr.mxu0 0.0
    %729 = vmatpush1.msra.mxu0 0.0
    %730 = vmatprep.subr.mxu0 0.0
    %731 = vmatpush1.msra.mxu0 0.0
    %732 = vmatprep.subr.mxu0 0.0
    %733 = vmatpush1.msra.mxu0 0.0
    %734 = vmatprep.subr.mxu0 0.0
    %735 = vmatpush1.msra.mxu0 0.0
    %736 = vmatprep.subr.mxu0 0.0
    %737 = vmatpush1.msra.mxu0 0.0
    %738 = vmatprep.subr.mxu0 0.0
    %739 = vmatpush1.msra.mxu0 0.0
    %740 = vmatprep.subr.mxu0 0.0
    %741 = vmatpush1.msra.mxu0 0.0
    %742 = vmatprep.subr.mxu0 0.0
    %743 = vmatpush1.msra.mxu0 0.0
    %744 = vmatprep.subr.mxu0 0.0
    %745 = vmatpush1.msra.mxu0 0.0
    %746 = vmatprep.subr.mxu0 0.0
    %747 = vmatpush1.msra.mxu0 0.0
    %748 = vmatprep.subr.mxu0 0.0
    %749 = vmatpush1.msra.mxu0 0.0
    %750 = vmatprep.subr.mxu0 0.0
    %751 = vmatpush1.msra.mxu0 0.0
    %752 = vmatprep.subr.mxu0 0.0
    %753 = vmatpush1.msra.mxu0 0.0
    %754 = vmatprep.subr.mxu0 0.0
    %755 = vmatpush1.msra.mxu0 0.0
    %756 = vmatprep.subr.mxu0 0.0
    %757 = vmatpush1.msra.mxu0 0.0
    %758 = vmatprep.subr.mxu0 0.0
    %759 = vmatpush1.msra.mxu0 0.0
    %760 = vmatprep.subr.mxu0 0.0
    %761 = vmatpush1.msra.mxu0 0.0
    %762 = vmatprep.subr.mxu0 0.0
    %763 = vmatpush1.msra.mxu0 0.0
    %764 = vmatprep.subr.mxu0 0.0
    %765 = vmatpush1.msra.mxu0 0.0
    %766 = vmatprep.subr.mxu0 0.0
    %767 = vmatpush1.msra.mxu0 0.0
    %768 = vmatprep.mubr.f32.mxu0 0.0
    %769 = vmatmul.mubr.f32.gmra.mrb[0].mxu0 %v699
    %v770 = vpop.f32.mrb[0].mxu0
    %v771 = vadd.f32 %v697, %v770
    %v772 = vpop.f32.mrb[0].mxu0
    %773 = vdwg.mxu0
    %vm774 = vcmp.gt.f32.partialorder %v771, 0.0
    %v775 = vmin.f32 %v771, 0.0
    %v776 = vmul.f32 %v775, 1.442695
    %v777 = vpow.pop %v776
    %v778 = vsub.f32 %v777, 1.0
    %v779 = vsel %vm774, %v771, %v778
    %v780 = vld [vmem:[#allocation7 + $0x14] sm:$0xf]
    %782 = vset.pattern.permute.xlu0 28
    %783 = vperm.xlu0 %782, %v780
    %v784 = vpop.permute.xlu0 %783
    %v786 = vsel %vm245, %v780, 0
    %v789 = vsel %vm159, %v779, 0
    %791 = vmatprep.subr.mxu0 0.0
    %792 = vmatpush1.msra.mxu0 %v789
    %793 = vmatprep.subr.mxu0 0.0
    %794 = vmatpush1.msra.mxu0 0.0
    %795 = vmatprep.subr.mxu0 0.0
    %796 = vmatpush1.msra.mxu0 0.0
    %797 = vmatprep.subr.mxu0 0.0
    %798 = vmatpush1.msra.mxu0 0.0
    %799 = vmatprep.subr.mxu0 0.0
    %800 = vmatpush1.msra.mxu0 0.0
    %801 = vmatprep.subr.mxu0 0.0
    %802 = vmatpush1.msra.mxu0 0.0
    %803 = vmatprep.subr.mxu0 0.0
    %804 = vmatpush1.msra.mxu0 0.0
    %805 = vmatprep.subr.mxu0 0.0
    %806 = vmatpush1.msra.mxu0 0.0
    %807 = vmatprep.subr.mxu0 0.0
    %808 = vmatpush1.msra.mxu0 0.0
    %809 = vmatprep.subr.mxu0 0.0
    %810 = vmatpush1.msra.mxu0 0.0
    %811 = vmatprep.subr.mxu0 0.0
    %812 = vmatpush1.msra.mxu0 0.0
    %813 = vmatprep.subr.mxu0 0.0
    %814 = vmatpush1.msra.mxu0 0.0
    %815 = vmatprep.subr.mxu0 0.0
    %816 = vmatpush1.msra.mxu0 0.0
    %817 = vmatprep.subr.mxu0 0.0
    %818 = vmatpush1.msra.mxu0 0.0
    %819 = vmatprep.subr.mxu0 0.0
    %820 = vmatpush1.msra.mxu0 0.0
    %821 = vmatprep.subr.mxu0 0.0
    %822 = vmatpush1.msra.mxu0 0.0
    %823 = vmatprep.subr.mxu0 0.0
    %824 = vmatpush1.msra.mxu0 0.0
    %825 = vmatprep.subr.mxu0 0.0
    %826 = vmatpush1.msra.mxu0 0.0
    %827 = vmatprep.subr.mxu0 0.0
    %828 = vmatpush1.msra.mxu0 0.0
    %829 = vmatprep.subr.mxu0 0.0
    %830 = vmatpush1.msra.mxu0 0.0
    %831 = vmatprep.subr.mxu0 0.0
    %832 = vmatpush1.msra.mxu0 0.0
    %833 = vmatprep.subr.mxu0 0.0
    %834 = vmatpush1.msra.mxu0 0.0
    %835 = vmatprep.subr.mxu0 0.0
    %836 = vmatpush1.msra.mxu0 0.0
    %837 = vmatprep.subr.mxu0 0.0
    %838 = vmatpush1.msra.mxu0 0.0
    %839 = vmatprep.subr.mxu0 0.0
    %840 = vmatpush1.msra.mxu0 0.0
    %841 = vmatprep.subr.mxu0 0.0
    %842 = vmatpush1.msra.mxu0 0.0
    %843 = vmatprep.subr.mxu0 0.0
    %844 = vmatpush1.msra.mxu0 0.0
    %845 = vmatprep.subr.mxu0 0.0
    %846 = vmatpush1.msra.mxu0 0.0
    %847 = vmatprep.subr.mxu0 0.0
    %848 = vmatpush1.msra.mxu0 0.0
    %849 = vmatprep.subr.mxu0 0.0
    %850 = vmatpush1.msra.mxu0 0.0
    %851 = vmatprep.subr.mxu0 0.0
    %852 = vmatpush1.msra.mxu0 0.0
    %853 = vmatprep.subr.mxu0 0.0
    %854 = vmatpush1.msra.mxu0 0.0
    %855 = vmatprep.mubr.f32.mxu0 0.0
    %856 = vmatmul.mubr.f32.gmra.mrb[0].mxu0 %v786
    %v857 = vpop.f32.mrb[0].mxu0
    %v858 = vadd.f32 %v784, %v857
    %v859 = vpop.f32.mrb[0].mxu0
    %860 = vdwg.mxu0
    %vm861 = vcmp.gt.f32.partialorder %v858, 0.0
    %v862 = vmin.f32 %v858, 0.0
    %v863 = vmul.f32 %v862, 1.442695
    %v864 = vpow.pop %v863
    %v865 = vsub.f32 %v864, 1.0
    %v866 = vsel %vm861, %v858, %v865
    %v867 = vadd.f32 %v866, %v599
    %869 = vrot.lane.b32.xlu0 %v867, 54
    %v870 = vpop.permute.xlu0 %869
    %872 = vst.msk [vmem:[#allocation2] sm:$0xf] %vm54, %v870
    %873 = vrot.lane.b32.xlu0 %v867, 38
    %v874 = vpop.permute.xlu0 %873
    %876 = vst.msk [vmem:[#allocation2 + $0x4] sm:$0xf] %vm54, %v874
    %v877 = vld [vmem:[#allocation2] sm:$0xf]
    %879 = vrot.lane.b32.xlu0 %v877, 77
    %v880 = vpop.permute.xlu0 %879
    %882 = vst.msk [vmem:[#allocation3] sm:$0xf] %vm65, %v880
    %v883 = vld [vmem:[#allocation2 + $0x4] sm:$0xf]
    %885 = vrot.lane.b32.xlu0 %v883, 93
    %v886 = vpop.permute.xlu0 %885
    %888 = vst.msk [vmem:[#allocation3] sm:$0xf] %vm72, %v886
    %v889 = vld [vmem:[#allocation2] sm:$0xf]
    %891 = vrot.lane.b32.xlu0 %v889, 76
    %v892 = vpop.permute.xlu0 %891
    %894 = vst.msk [vmem:[#allocation3 + $0x4] sm:$0xf] %vm65, %v892
    %v895 = vld [vmem:[#allocation2 + $0x4] sm:$0xf]
    %897 = vrot.lane.b32.xlu0 %v895, 92
    %v898 = vpop.permute.xlu0 %897
    %900 = vst.msk [vmem:[#allocation3 + $0x4] sm:$0xf] %vm72, %v898
    %v901 = vld [vmem:[#allocation2] sm:$0xf]
    %903 = vrot.lane.b32.xlu0 %v901, 75
    %v904 = vpop.permute.xlu0 %903
    %906 = vst.msk [vmem:[#allocation3 + $0x8] sm:$0xf] %vm65, %v904
    %v907 = vld [vmem:[#allocation2 + $0x4] sm:$0xf]
    %909 = vrot.lane.b32.xlu0 %v907, 91
    %v910 = vpop.permute.xlu0 %909
    %912 = vst.msk [vmem:[#allocation3 + $0x8] sm:$0xf] %vm72, %v910
    %v913 = vld [vmem:[#allocation2] sm:$0xf]
    %915 = vrot.lane.b32.xlu0 %v913, 74
    %v916 = vpop.permute.xlu0 %915
    %918 = vst.msk [vmem:[#allocation3 + $0xc] sm:$0xf] %vm65, %v916
    %v919 = vld [vmem:[#allocation2 + $0x4] sm:$0xf]
    %921 = vrot.lane.b32.xlu0 %v919, 90
    %v922 = vpop.permute.xlu0 %921
    %924 = vst.msk [vmem:[#allocation3 + $0xc] sm:$0xf] %vm72, %v922
    %v925 = vld [vmem:[#allocation3] sm:$0xff]
    %v926 = vld [vmem:[#allocation3 + $0x8] sm:$0xff]
    %v927 = vld [vmem:[#allocation7 + $0x18] sm:$0xff]
    %929 = vset.pattern.permute.xlu0 28
    %930 = vperm.xlu0 %929, %v927
    %v931 = vpop.permute.xlu0 %930
    %v933 = vsel %vm48, %v927, 0
    %935 = vmatprep.subr.mxu0 0.0
    %936 = vmatpush1.msra.mxu0 %v925
    %937 = vmatprep.subr.mxu0 0.0
    %938 = vmatpush1.msra.mxu0 %v926
    %939 = vmatprep.subr.mxu0 0.0
    %940 = vmatpush1.msra.mxu0 0.0
    %941 = vmatprep.subr.mxu0 0.0
    %942 = vmatpush1.msra.mxu0 0.0
    %943 = vmatprep.subr.mxu0 0.0
    %944 = vmatpush1.msra.mxu0 0.0
    %945 = vmatprep.subr.mxu0 0.0
    %946 = vmatpush1.msra.mxu0 0.0
    %947 = vmatprep.subr.mxu0 0.0
    %948 = vmatpush1.msra.mxu0 0.0
    %949 = vmatprep.subr.mxu0 0.0
    %950 = vmatpush1.msra.mxu0 0.0
    %951 = vmatprep.subr.mxu0 0.0
    %952 = vmatpush1.msra.mxu0 0.0
    %953 = vmatprep.subr.mxu0 0.0
    %954 = vmatpush1.msra.mxu0 0.0
    %955 = vmatprep.subr.mxu0 0.0
    %956 = vmatpush1.msra.mxu0 0.0
    %957 = vmatprep.subr.mxu0 0.0
    %958 = vmatpush1.msra.mxu0 0.0
    %959 = vmatprep.subr.mxu0 0.0
    %960 = vmatpush1.msra.mxu0 0.0
    %961 = vmatprep.subr.mxu0 0.0
    %962 = vmatpush1.msra.mxu0 0.0
    %963 = vmatprep.subr.mxu0 0.0
    %964 = vmatpush1.msra.mxu0 0.0
    %965 = vmatprep.subr.mxu0 0.0
    %966 = vmatpush1.msra.mxu0 0.0
    %967 = vmatprep.subr.mxu0 0.0
    %968 = vmatpush1.msra.mxu0 0.0
    %969 = vmatprep.subr.mxu0 0.0
    %970 = vmatpush1.msra.mxu0 0.0
    %971 = vmatprep.subr.mxu0 0.0
    %972 = vmatpush1.msra.mxu0 0.0
    %973 = vmatprep.subr.mxu0 0.0
    %974 = vmatpush1.msra.mxu0 0.0
    %975 = vmatprep.subr.mxu0 0.0
    %976 = vmatpush1.msra.mxu0 0.0
    %977 = vmatprep.subr.mxu0 0.0
    %978 = vmatpush1.msra.mxu0 0.0
    %979 = vmatprep.subr.mxu0 0.0
    %980 = vmatpush1.msra.mxu0 0.0
    %981 = vmatprep.subr.mxu0 0.0
    %982 = vmatpush1.msra.mxu0 0.0
    %983 = vmatprep.subr.mxu0 0.0
    %984 = vmatpush1.msra.mxu0 0.0
    %985 = vmatprep.subr.mxu0 0.0
    %986 = vmatpush1.msra.mxu0 0.0
    %987 = vmatprep.subr.mxu0 0.0
    %988 = vmatpush1.msra.mxu0 0.0
    %989 = vmatprep.subr.mxu0 0.0
    %990 = vmatpush1.msra.mxu0 0.0
    %991 = vmatprep.subr.mxu0 0.0
    %992 = vmatpush1.msra.mxu0 0.0
    %993 = vmatprep.subr.mxu0 0.0
    %994 = vmatpush1.msra.mxu0 0.0
    %995 = vmatprep.subr.mxu0 0.0
    %996 = vmatpush1.msra.mxu0 0.0
    %997 = vmatprep.subr.mxu0 0.0
    %998 = vmatpush1.msra.mxu0 0.0
    %999 = vmatprep.mubr.f32.mxu0 0.0
    %1000 = vmatmul.mubr.f32.gmra.mrb[0].mxu0 %v933
    %v1001 = vpop.f32.mrb[0].mxu0
    %v1002 = vadd.f32 %v931, %v1001
    %v1003 = vpop.f32.mrb[0].mxu0
    %1004 = vdwg.mxu0
    %v1005 = vlaneseq
    %v1006 = vshrl.u32 %v1005, 7
    %v1007 = vadd.s32 %v1006, 8
    %v1008 = vadd.s32 %v1006, 16
    %v1009 = vadd.s32 %v1006, 24
    %v1010 = vlaneseq
    %v1011 = vand.u32 %v1010, 127
    %v1012 = vmul.u32 %v1011, 2
    %vm1013 = vcmp.eq.s32.totalorder %v1006, %v1012
    %vm1014 = vcmp.eq.s32.totalorder %v1007, %v1012
    %vm1015 = vcmp.eq.s32.totalorder %v1008, %v1012
    %vm1016 = vcmp.eq.s32.totalorder %v1009, %v1012
    %v1017 = vsel %vm1013, 1, 0
    %v1018 = vsel %vm1014, 1, 0
    %v1019 = vsel %vm1015, 1, 0
    %v1020 = vsel %vm1016, 1, 0
    %v1021 = vcvt.s32.f32 %v1017
    %v1022 = vcvt.s32.f32 %v1018
    %v1023 = vcvt.s32.f32 %v1019
    %v1024 = vcvt.s32.f32 %v1020
    %vm1025 = vcmask 261120
    %v1027 = vsel %vm1025, %v1002, 0
    %1029 = vmatprep.subr.mxu0 0.0
    %1030 = vmatpush1.msra.mxu0 %v1021
    %1031 = vmatprep.subr.mxu0 0.0
    %1032 = vmatpush1.msra.mxu0 %v1022
    %1033 = vmatprep.subr.mxu0 0.0
    %1034 = vmatpush1.msra.mxu0 %v1023
    %1035 = vmatprep.subr.mxu0 0.0
    %1036 = vmatpush1.msra.mxu0 %v1024
    %1037 = vmatprep.subr.mxu0 0.0
    %1038 = vmatpush1.msra.mxu0 0.0
    %1039 = vmatprep.subr.mxu0 0.0
    %1040 = vmatpush1.msra.mxu0 0.0
    %1041 = vmatprep.subr.mxu0 0.0
    %1042 = vmatpush1.msra.mxu0 0.0
    %1043 = vmatprep.subr.mxu0 0.0
    %1044 = vmatpush1.msra.mxu0 0.0
    %1045 = vmatprep.subr.mxu0 0.0
    %1046 = vmatpush1.msra.mxu0 0.0
    %1047 = vmatprep.subr.mxu0 0.0
    %1048 = vmatpush1.msra.mxu0 0.0
    %1049 = vmatprep.subr.mxu0 0.0
    %1050 = vmatpush1.msra.mxu0 0.0
    %1051 = vmatprep.subr.mxu0 0.0
    %1052 = vmatpush1.msra.mxu0 0.0
    %1053 = vmatprep.subr.mxu0 0.0
    %1054 = vmatpush1.msra.mxu0 0.0
    %1055 = vmatprep.subr.mxu0 0.0
    %1056 = vmatpush1.msra.mxu0 0.0
    %1057 = vmatprep.subr.mxu0 0.0
    %1058 = vmatpush1.msra.mxu0 0.0
    %1059 = vmatprep.subr.mxu0 0.0
    %1060 = vmatpush1.msra.mxu0 0.0
    %1061 = vmatprep.subr.mxu0 0.0
    %1062 = vmatpush1.msra.mxu0 0.0
    %1063 = vmatprep.subr.mxu0 0.0
    %1064 = vmatpush1.msra.mxu0 0.0
    %1065 = vmatprep.subr.mxu0 0.0
    %1066 = vmatpush1.msra.mxu0 0.0
    %1067 = vmatprep.subr.mxu0 0.0
    %1068 = vmatpush1.msra.mxu0 0.0
    %1069 = vmatprep.subr.mxu0 0.0
    %1070 = vmatpush1.msra.mxu0 0.0
    %1071 = vmatprep.subr.mxu0 0.0
    %1072 = vmatpush1.msra.mxu0 0.0
    %1073 = vmatprep.subr.mxu0 0.0
    %1074 = vmatpush1.msra.mxu0 0.0
    %1075 = vmatprep.subr.mxu0 0.0
    %1076 = vmatpush1.msra.mxu0 0.0
    %1077 = vmatprep.subr.mxu0 0.0
    %1078 = vmatpush1.msra.mxu0 0.0
    %1079 = vmatprep.subr.mxu0 0.0
    %1080 = vmatpush1.msra.mxu0 0.0
    %1081 = vmatprep.subr.mxu0 0.0
    %1082 = vmatpush1.msra.mxu0 0.0
    %1083 = vmatprep.subr.mxu0 0.0
    %1084 = vmatpush1.msra.mxu0 0.0
    %1085 = vmatprep.subr.mxu0 0.0
    %1086 = vmatpush1.msra.mxu0 0.0
    %1087 = vmatprep.subr.mxu0 0.0
    %1088 = vmatpush1.msra.mxu0 0.0
    %1089 = vmatprep.subr.mxu0 0.0
    %1090 = vmatpush1.msra.mxu0 0.0
    %1091 = vmatprep.subr.mxu0 0.0
    %1092 = vmatpush1.msra.mxu0 0.0
    %1093 = vmatprep.mubr.f32.mxu0 0.0
    %1094 = vmatmul.mubr.f32.gmra.mrb[0].mxu0 %v1027
    %v1095 = vpop.f32.mrb[0].mxu0
    %v1096 = vadd.f32 0.0, %v1095
    %v1097 = vpop.f32.mrb[0].mxu0
    %1098 = vdwg.mxu0
    %vm1099 = vcmp.gt.f32.partialorder %v1096, 0.0
    %v1100 = vmin.f32 %v1096, 0.0
    %v1101 = vmul.f32 %v1100, 1.442695
    %v1102 = vpow.pop %v1101
    %v1103 = vsub.f32 %v1102, 1.0
    %v1104 = vsel %vm1099, %v1096, %v1103
    %1105 = vst.msk [vmem:[#allocation9] sm:$0xff] %vm48, %v1104
    // Predicated region
    $region18: #{tpu_custom_call.1} parent=1 // pred_check
      _
    $region19: #{tpu_custom_call.1} parent=1 // pred_check_branch
      %1107 = sbr.rel (0) target = $region21
    $region20: #{tpu_custom_call.1} parent=1 // pred_region
      %s1109 = ssub.s32 128, 128
      %1110 = vsyncadd [#allocation6], %s1109
      %s1112 = sshll.u32 [#allocation9], 4
      %s1113 = int_to_ptr.vmem [resolvable:$true] %s1112
      %1115 = dma.vmem_to_hbm [thread:$0]  %s1113, 128, %s2, [#allocation6]
    $region21: #{tpu_custom_call.1} parent=1 // pred_fallthru
      _
    // Predicated region
    $region22: #{tpu_custom_call.1} parent=1 // pred_check
      _
    $region23: #{tpu_custom_call.1} parent=1 // pred_check_branch
      %1117 = sbr.rel (0) target = $region25
    $region24: #{tpu_custom_call.1} parent=1 // pred_region
      %1118 = dma.done [#allocation6], 128
    $region25: #{tpu_custom_call.1} parent=1 // pred_fallthru
      _
    %1119 = vsyncpa [#allocation5], 1
    %1120 = vsyncpa [#allocation8], 1
    %1121 = vsyncpa [#allocation6], 1

</llo_original>
